<compile_context>
chip_gen: v6e
topology: v6e:2x2x1
jax: 0.10.0
libtpu: 0.0.40
codegen_flags: <defaults>
</compile_context>

<pallas_src>
import jax
import jax.numpy as jnp
from jax.experimental import pallas as pl
from jax.experimental.pallas import tpu as pltpu


LANE = 128                               # lane padding for feature-like dims
NODE_TILE = 512                          # node-dim tile for the Â aggregation
RESIDENT_VMEM_BUDGET = 48 * 1024 * 1024  # v7x-safe kernel-2 VMEM budget


def _round_up(x, m):
    return ((x + m - 1) // m) * m


# ------------- kernel 1: XW1s = d^{-1/2} * (X @ W1)   (bf16 out) ------------
def xw1_kernel(x_ref, w1_ref, dsc_ref, out_ref):
    xw = jnp.dot(x_ref[...], w1_ref[...], preferred_element_type=jnp.float32)
    out_ref[...] = (xw * dsc_ref[...]).astype(out_ref.dtype)


# ------------- kernel 2: T = relu(d^{-1/2}*((A+I) @ XW1s) + b1) @ W2 --------
# grid = (row tiles i [parallel], reduction tiles k [arbitrary])
# Resident variant: XW1s block is the full (n_pad, h_pad) array, sliced by k.
def agg_kernel_resident(a_ref, xw1_ref, dsc_ref, b1_ref, w2_ref, t_ref, acc_ref):
    k = pl.program_id(1)
    tile_k = a_ref.shape[1]

    @pl.when(k == 0)
    def _():
        acc_ref[...] = jnp.zeros_like(acc_ref)

    # int8 0/1 adjacency tile -> bf16 (via f32; VPU work hidden under the
    # HBM-bound stream), bf16 x bf16 -> f32 accumulate on the MXU.
    a_bf = a_ref[...].astype(jnp.float32).astype(jnp.bfloat16)
    start = pl.multiple_of(k * tile_k, tile_k)
    xw1_chunk = xw1_ref[pl.ds(start, tile_k), :]
    acc_ref[...] += jnp.dot(a_bf, xw1_chunk, preferred_element_type=jnp.float32)

    @pl.when(k == pl.num_programs(1) - 1)
    def _():
        h1 = jnp.maximum(acc_ref[...] * dsc_ref[...] + b1_ref[...], 0.0)
        t_ref[...] = jnp.dot(h1.astype(jnp.bfloat16), w2_ref[...],
                             preferred_element_type=jnp.float32).astype(t_ref.dtype)


# Streamed fallback (XW1s block is the k-tile) for very large graphs where
# the resident copy would not fit the per-generation VMEM budget.
def agg_kernel_streamed(a_ref, xw1_ref, dsc_ref, b1_ref, w2_ref, t_ref, acc_ref):
    k = pl.program_id(1)

    @pl.when(k == 0)
    def _():
        acc_ref[...] = jnp.zeros_like(acc_ref)

    a_bf = a_ref[...].astype(jnp.float32).astype(jnp.bfloat16)
    acc_ref[...] += jnp.dot(a_bf, xw1_ref[...], preferred_element_type=jnp.float32)

    @pl.when(k == pl.num_programs(1) - 1)
    def _():
        h1 = jnp.maximum(acc_ref[...] * dsc_ref[...] + b1_ref[...], 0.0)
        t_ref[...] = jnp.dot(h1.astype(jnp.bfloat16), w2_ref[...],
                             preferred_element_type=jnp.float32).astype(t_ref.dtype)


# ------------- kernel 3: y = ((PA @ T) + b2) @ Wl + bl ----------------------
# grid = (reduction tiles k over nodes)
def head_kernel(pa_ref, t_ref, b2_ref, wl_ref, bl_ref, out_ref, acc_ref):
    k = pl.program_id(0)

    @pl.when(k == 0)
    def _():
        acc_ref[...] = jnp.zeros_like(acc_ref)

    acc_ref[...] += jnp.dot(pa_ref[...], t_ref[...],
                            preferred_element_type=jnp.float32)

    @pl.when(k == pl.num_programs(0) - 1)
    def _():
        pooled = acc_ref[...] + b2_ref[...]
        out_ref[...] = (jnp.dot(pooled, wl_ref[...],
                                preferred_element_type=jnp.float32)
                        + bl_ref[...])


def gnn_forward(x, edge_index, batch, params, num_graphs):
    """Dense-Â GCN forward. Glue (Â build, P@Â fold, padding) is plain JAX;
    all matmuls / bias / relu / pooling reductions run in Pallas kernels."""
    w1, b1, w2, b2, wl, bl = params
    n, f = x.shape
    h = w1.shape[1]
    c = wl.shape[1]

    # ---- padded sizes (lane-dense features, tile-aligned node dim) ----
    f_pad = _round_up(f, LANE)
    h_pad = _round_up(h, LANE)
    c_pad = _round_up(c, LANE)
    tile = min(NODE_TILE, _round_up(n, LANE))
    n_pad = _round_up(n, tile)
    b_pad = _round_up(num_graphs, 8)
    n_tiles = n_pad // tile

    # ---- A + I as an 8-bit 0/1 matrix; D^{-1/2} kept as a vector ----
    # NOTE: deg = row-sums of (A+I) matches PyG gcn_norm for loop-free
    # undirected edge lists (both directions present), as in the test graph.
    src, dst = edge_index[0], edge_index[1]
    adj = jnp.zeros((n, n), jnp.int32).at[dst, src].add(1)
    adj = adj + jnp.eye(n, dtype=jnp.int32)
    deg = adj.sum(axis=1).astype(jnp.float32)
    d_inv_sqrt = jnp.where(deg > 0, jax.lax.rsqrt(deg), 0.0)

    # ---- mean-pool matrix P and the folded PA = P @ Â (B x N, cheap glue) --
    onehot = (batch[None, :] == jnp.arange(num_graphs)[:, None]).astype(jnp.float32)
    counts = jnp.maximum(onehot.sum(axis=1, keepdims=True), 1.0)
    pool = onehot / counts
    pa = ((pool * d_inv_sqrt[None, :]) @ adj.astype(jnp.float32)) * d_inv_sqrt[None, :]

    # ---- zero-pad everything to lane / tile multiples ----
    x_p = jnp.zeros((n_pad, f_pad), jnp.bfloat16).at[:n, :f].set(x.astype(jnp.bfloat16))
    a_p = jnp.zeros((n_pad, n_pad), jnp.int8).at[:n, :n].set(adj.astype(jnp.int8))
    pa_p = (jnp.zeros((b_pad, n_pad), jnp.bfloat16)
            .at[:num_graphs, :n].set(pa.astype(jnp.bfloat16)))
    dsc_p = jnp.zeros((n_pad, 1), jnp.float32).at[:n, 0].set(d_inv_sqrt)
    w1_p = jnp.zeros((f_pad, h_pad), jnp.bfloat16).at[:f, :h].set(w1.astype(jnp.bfloat16))
    b1_p = jnp.zeros((1, h_pad), jnp.float32).at[:, :h].set(b1)
    w2_p = jnp.zeros((h_pad, h_pad), jnp.bfloat16).at[:h, :h].set(w2.astype(jnp.bfloat16))
    b2_p = jnp.zeros((1, h_pad), jnp.float32).at[:, :h].set(b2)
    wl_p = jnp.zeros((h_pad, c_pad), jnp.float32).at[:h, :c].set(wl)
    bl_p = jnp.zeros((1, c_pad), jnp.float32).at[:, :c].set(bl)

    # ---- kernel 1: XW1s = d^{-1/2} * (X @ W1), bf16 output ----
    xw1 = pl.pallas_call(
        xw1_kernel,
        out_shape=jax.ShapeDtypeStruct((n_pad, h_pad), jnp.bfloat16),
        grid=(n_tiles,),
        in_specs=[pl.BlockSpec((tile, f_pad), lambda k: (k, 0)),
                  pl.BlockSpec((f_pad, h_pad), lambda k: (0, 0)),
                  pl.BlockSpec((tile, 1), lambda k: (k, 0))],
        out_specs=pl.BlockSpec((tile, h_pad), lambda k: (k, 0)),
        compiler_params=pltpu.CompilerParams(
            dimension_semantics=("parallel",)),
    )(x_p, w1_p, dsc_p)

    # ---- kernel 2: T = relu(d^{-1/2}*((A+I)@XW1s) + b1) @ W2, bf16 out ----
    # VMEM footprint of the resident-XW1 variant (conservative: 2 buffers
    # for every auto-pipelined operand).
    resident_bytes = (
        2 * tile * tile * 1            # int8 Â tile, double-buffered
        + 2 * n_pad * h_pad * 2        # resident bf16 XW1
        + 2 * tile * h_pad * 2         # bf16 T out, double-buffered
        + tile * h_pad * 4             # f32 accumulator scratch
        + 2 * h_pad * h_pad * 2        # bf16 W2
        + 2 * (tile + h_pad + c_pad) * 4
    )
    use_resident = resident_bytes <= RESIDENT_VMEM_BUDGET
    if use_resident:
        agg_kernel = agg_kernel_resident
        xw1_spec = pl.BlockSpec((n_pad, h_pad), lambda i, k: (0, 0))
        vmem_limit = RESIDENT_VMEM_BUDGET
    else:
        agg_kernel = agg_kernel_streamed
        xw1_spec = pl.BlockSpec((tile, h_pad), lambda i, k: (k, 0))
        vmem_limit = 40 * 1024 * 1024

    agg_cost = pl.CostEstimate(
        flops=2 * n_pad * n_pad * h_pad + 2 * n_pad * h_pad * h_pad,
        transcendentals=0,
        bytes_accessed=(n_pad * n_pad                       # int8 A+I
                        + (1 if use_resident else n_tiles) * n_pad * h_pad * 2
                        + 2 * n_pad * h_pad                 # bf16 T out
                        + 2 * h_pad * h_pad + 4 * h_pad + 4 * n_pad),
    )
    t = pl.pallas_call(
        agg_kernel,
        out_shape=jax.ShapeDtypeStruct((n_pad, h_pad), jnp.bfloat16),
        grid=(n_tiles, n_tiles),
        in_specs=[pl.BlockSpec((tile, tile), lambda i, k: (i, k)),
                  xw1_spec,
                  pl.BlockSpec((tile, 1), lambda i, k: (i, 0)),
                  pl.BlockSpec((1, h_pad), lambda i, k: (0, 0)),
                  pl.BlockSpec((h_pad, h_pad), lambda i, k: (0, 0))],
        out_specs=pl.BlockSpec((tile, h_pad), lambda i, k: (i, 0)),
        scratch_shapes=[pltpu.VMEM((tile, h_pad), jnp.float32)],
        compiler_params=pltpu.CompilerParams(
            dimension_semantics=("parallel", "arbitrary"),
            vmem_limit_bytes=vmem_limit),
        cost_estimate=agg_cost,
    )(a_p, xw1, dsc_p, b1_p, w2_p)

    # ---- kernel 3: pooled = PA @ T + b2 ; y = pooled @ Wl + bl ----
    out_pad = pl.pallas_call(
        head_kernel,
        out_shape=jax.ShapeDtypeStruct((b_pad, c_pad), jnp.float32),
        grid=(n_tiles,),
        in_specs=[pl.BlockSpec((b_pad, tile), lambda k: (0, k)),
                  pl.BlockSpec((tile, h_pad), lambda k: (k, 0)),
                  pl.BlockSpec((1, h_pad), lambda k: (0, 0)),
                  pl.BlockSpec((h_pad, c_pad), lambda k: (0, 0)),
                  pl.BlockSpec((1, c_pad), lambda k: (0, 0))],
        out_specs=pl.BlockSpec((b_pad, c_pad), lambda k: (0, 0)),
        scratch_shapes=[pltpu.VMEM((b_pad, h_pad), jnp.float32)],
        compiler_params=pltpu.CompilerParams(
            dimension_semantics=("arbitrary",)),
    )(pa_p, t, b2_p, wl_p, bl_p)

    return out_pad[:num_graphs, :c]


gnn_forward_jit = jax.jit(gnn_forward, static_argnums=(4,))


def init_params(key, in_channels, hidden_channels, num_classes):
    k1, k2, k3, k4, k5, k6 = jax.random.split(key, 6)
    scale = 0.1
    w1 = scale * jax.random.normal(k1, (in_channels, hidden_channels), jnp.float32)
    b1 = scale * jax.random.normal(k2, (1, hidden_channels), jnp.float32)
    w2 = scale * jax.random.normal(k3, (hidden_channels, hidden_channels), jnp.float32)
    b2 = scale * jax.random.normal(k4, (1, hidden_channels), jnp.float32)
    wl = scale * jax.random.normal(k5, (hidden_channels, num_classes), jnp.float32)
    bl = scale * jax.random.normal(k6, (1, num_classes), jnp.float32)
    return (w1, b1, w2, b2, wl, bl)


if __name__ == "__main__":
    key = jax.random.PRNGKey(0)

    in_channels = 8
    hidden_channels = 32
    num_classes = 4
    num_nodes = 16       # 2 graphs x 8 nodes
    num_graphs = 2

    kx, kp = jax.random.split(key)
    x = jax.random.normal(kx, (num_nodes, in_channels), jnp.float32)

    # Two ring graphs of 8 nodes each (undirected: both directions listed).
    edges = []
    for g in range(num_graphs):
        base = g * 8
        for i in range(8):
            a = base + i
            b = base + (i + 1) % 8
            edges.append((a, b))
            edges.append((b, a))
    edge_index = jnp.array(edges, dtype=jnp.int32).T               # (2, E)
    batch = jnp.repeat(jnp.arange(num_graphs, dtype=jnp.int32), 8)  # (N,)

    params = init_params(kp, in_channels, hidden_channels, num_classes)

    out = gnn_forward_jit(x, edge_index, batch, params, num_graphs)
    jax.block_until_ready(out)
    assert out.shape == (num_graphs, num_classes)
    print("KERNEL_OK")
</pallas_src>

<mosaic_0001>
module attributes {stable_mosaic.version = 11 : i64} {
  func.func private @main(%arg0: i32) attributes {dimension_semantics = [#tpu.dimension_semantics<core_parallel>], iteration_bounds = array<i64: 2>, tpu.core_type = #tpu.core_type<sc_scalar_subcore>, window_params = []} {
    return
  }
}

module attributes {stable_mosaic.version = 11 : i64} {
  func.func private @main(%arg0: i32) attributes {dimension_semantics = [#tpu.dimension_semantics<core_parallel>], iteration_bounds = array<i64: 2>, tpu.core_type = #tpu.core_type<sc_scalar_subcore>, window_params = []} {
    return
  }
}

module attributes {stable_mosaic.version = 11 : i64} {
  func.func @xw1_kernel(%arg0: i32, %arg1: memref<128x128xbf16, #tpu.memory_space<vmem>>, %arg2: memref<128x128xbf16, #tpu.memory_space<vmem>>, %arg3: memref<128x1xf32, #tpu.memory_space<vmem>>, %arg4: memref<128x128xbf16, #tpu.memory_space<vmem>>) attributes {dimension_semantics = [#tpu.dimension_semantics<parallel>], iteration_bounds = array<i64: 1>, scalar_prefetch = 0 : i64, scratch_operands = 0 : i64, tpu.core_type = #tpu.core_type<tc>, window_params = [{transform_indices = @transform_0, window_bounds = array<i64: 128, 128>}, {pipeline_mode = #tpu.pipeline_mode<synchronous>, transform_indices = @transform_1, window_bounds = array<i64: 128, 128>}, {transform_indices = @transform_2, window_bounds = array<i64: 128, 1>}, {transform_indices = @transform_3, window_bounds = array<i64: 128, 128>}]} {
    %c0 = arith.constant 0 : index
    %c0_0 = arith.constant 0 : index
    %0 = vector.load %arg1[%c0, %c0_0] : memref<128x128xbf16, #tpu.memory_space<vmem>>, vector<128x128xbf16>
    %c0_1 = arith.constant 0 : index
    %c0_2 = arith.constant 0 : index
    %1 = vector.load %arg2[%c0_1, %c0_2] : memref<128x128xbf16, #tpu.memory_space<vmem>>, vector<128x128xbf16>
    %cst = arith.constant dense<0.000000e+00> : vector<128x128xf32>
    %2 = tpu.matmul %0, %1, %cst {dimension_numbers = #tpu.dot_dimension_numbers<[1], [0], [0], [1], [0, 0, 1, 1], [], []>} : vector<128x128xbf16>, vector<128x128xbf16>, vector<128x128xf32> -> vector<128x128xf32>
    %c0_3 = arith.constant 0 : index
    %c0_4 = arith.constant 0 : index
    %3 = vector.load %arg3[%c0_3, %c0_4] : memref<128x1xf32, #tpu.memory_space<vmem>>, vector<128x1xf32>
    %4 = vector.broadcast %3 : vector<128x1xf32> to vector<128x128xf32>
    %5 = arith.mulf %2, %4 : vector<128x128xf32>
    %6 = arith.truncf %5 : vector<128x128xf32> to vector<128x128xbf16>
    %c0_5 = arith.constant 0 : index
    %c0_6 = arith.constant 0 : index
    %7 = vector.load %arg4[%c0_5, %c0_6] : memref<128x128xbf16, #tpu.memory_space<vmem>>, vector<128x128xbf16>
    tpu.vector_store %arg4[%c0_5, %c0_6], %6 {strides = array<i32>} : memref<128x128xbf16, #tpu.memory_space<vmem>>, vector<128x128xbf16>,
    return
  }
  func.func @transform_0(%arg0: i32) -> (i32, i32) {
    %c0_i32 = arith.constant 0 : i32
    %c0_i32_0 = arith.constant 0 : i32
    return %arg0, %c0_i32 : i32, i32
  }
  func.func @transform_1(%arg0: i32) -> (i32, i32) {
    %c0_i32 = arith.constant 0 : i32
    %c0_i32_0 = arith.constant 0 : i32
    %c0_i32_1 = arith.constant 0 : i32
    return %c0_i32, %c0_i32_0 : i32, i32
  }
  func.func @transform_2(%arg0: i32) -> (i32, i32) {
    %c0_i32 = arith.constant 0 : i32
    %c0_i32_0 = arith.constant 0 : i32
    return %arg0, %c0_i32 : i32, i32
  }
  func.func @transform_3(%arg0: i32) -> (i32, i32) {
    %c0_i32 = arith.constant 0 : i32
    %c0_i32_0 = arith.constant 0 : i32
    return %arg0, %c0_i32 : i32, i32
  }
}

module attributes {stable_mosaic.version = 11 : i64} {
  func.func @agg_kernel_resident(%arg0: i32, %arg1: i32, %arg2: memref<128x128xi8, #tpu.memory_space<vmem>>, %arg3: memref<128x128xbf16, #tpu.memory_space<vmem>>, %arg4: memref<128x1xf32, #tpu.memory_space<vmem>>, %arg5: memref<1x128xf32, #tpu.memory_space<vmem>>, %arg6: memref<128x128xbf16, #tpu.memory_space<vmem>>, %arg7: memref<128x128xbf16, #tpu.memory_space<vmem>>, %arg8: memref<128x128xf32, #tpu.memory_space<vmem>>) attributes {dimension_semantics = [#tpu.dimension_semantics<parallel>, #tpu.dimension_semantics<arbitrary>], iteration_bounds = array<i64: 1, 1>, scalar_prefetch = 0 : i64, scratch_operands = 1 : i64, tpu.core_type = #tpu.core_type<tc>, window_params = [{transform_indices = @transform_0, window_bounds = array<i64: 128, 128>}, {pipeline_mode = #tpu.pipeline_mode<synchronous>, transform_indices = @transform_1, window_bounds = array<i64: 128, 128>}, {transform_indices = @transform_2, window_bounds = array<i64: 128, 1>}, {pipeline_mode = #tpu.pipeline_mode<synchronous>, transform_indices = @transform_3, window_bounds = array<i64: 1, 128>}, {pipeline_mode = #tpu.pipeline_mode<synchronous>, transform_indices = @transform_4, window_bounds = array<i64: 128, 128>}, {transform_indices = @transform_5, window_bounds = array<i64: 128, 128>}]} {
    %c0_i32 = arith.constant 0 : i32
    %0 = arith.cmpi eq, %arg1, %c0_i32 : i32
    %1 = arith.extui %0 : i1 to i32
    %c0_i32_0 = arith.constant 0 : i32
    %2 = arith.cmpi ne, %1, %c0_i32_0 : i32
    scf.if %2 {
      %cst_9 = arith.constant 0.000000e+00 : f32
      %17 = vector.broadcast %cst_9 : f32 to vector<128x128xf32>
      %c0_10 = arith.constant 0 : index
      %c0_11 = arith.constant 0 : index
      %18 = vector.load %arg8[%c0_10, %c0_11] : memref<128x128xf32, #tpu.memory_space<vmem>>, vector<128x128xf32>
      tpu.vector_store %arg8[%c0_10, %c0_11], %17 {strides = array<i32>} : memref<128x128xf32, #tpu.memory_space<vmem>>, vector<128x128xf32>,
    } else {
    }
    %c0 = arith.constant 0 : index
    %c0_1 = arith.constant 0 : index
    %3 = vector.load %arg2[%c0, %c0_1] : memref<128x128xi8, #tpu.memory_space<vmem>>, vector<128x128xi8>
    %4 = arith.sitofp %3 : vector<128x128xi8> to vector<128x128xf32>
    %5 = arith.truncf %4 : vector<128x128xf32> to vector<128x128xbf16>
    %c128_i32 = arith.constant 128 : i32
    %6 = arith.muli %arg1, %c128_i32 : i32
    %7 = tpu.assume_multiple %6, 128 : i32
    %8 = arith.index_cast %7 : i32 to index
    %c0_2 = arith.constant 0 : index
    %9 = vector.load %arg3[%8, %c0_2] : memref<128x128xbf16, #tpu.memory_space<vmem>>, vector<128x128xbf16>
    %c0_3 = arith.constant 0 : index
    %c0_4 = arith.constant 0 : index
    %10 = vector.load %arg8[%c0_3, %c0_4] : memref<128x128xf32, #tpu.memory_space<vmem>>, vector<128x128xf32>
    %cst = arith.constant dense<0.000000e+00> : vector<128x128xf32>
    %11 = tpu.matmul %5, %9, %cst {dimension_numbers = #tpu.dot_dimension_numbers<[1], [0], [0], [1], [0, 0, 1, 1], [], []>} : vector<128x128xbf16>, vector<128x128xbf16>, vector<128x128xf32> -> vector<128x128xf32>
    %12 = arith.addf %10, %11 : vector<128x128xf32>
    %c0_5 = arith.constant 0 : index
    %c0_6 = arith.constant 0 : index
    %13 = vector.load %arg8[%c0_5, %c0_6] : memref<128x128xf32, #tpu.memory_space<vmem>>, vector<128x128xf32>
    tpu.vector_store %arg8[%c0_5, %c0_6], %12 {strides = array<i32>} : memref<128x128xf32, #tpu.memory_space<vmem>>, vector<128x128xf32>,
    %c0_i32_7 = arith.constant 0 : i32
    %14 = arith.cmpi eq, %arg1, %c0_i32_7 : i32
    %15 = arith.extui %14 : i1 to i32
    %c0_i32_8 = arith.constant 0 : i32
    %16 = arith.cmpi ne, %15, %c0_i32_8 : i32
    scf.if %16 {
      %c0_9 = arith.constant 0 : index
      %c0_10 = arith.constant 0 : index
      %17 = vector.load %arg8[%c0_9, %c0_10] : memref<128x128xf32, #tpu.memory_space<vmem>>, vector<128x128xf32>
      %c0_11 = arith.constant 0 : index
      %c0_12 = arith.constant 0 : index
      %18 = vector.load %arg4[%c0_11, %c0_12] : memref<128x1xf32, #tpu.memory_space<vmem>>, vector<128x1xf32>
      %19 = vector.broadcast %18 : vector<128x1xf32> to vector<128x128xf32>
      %20 = arith.mulf %17, %19 : vector<128x128xf32>
      %c0_13 = arith.constant 0 : index
      %c0_14 = arith.constant 0 : index
      %21 = vector.load %arg5[%c0_13, %c0_14] : memref<1x128xf32, #tpu.memory_space<vmem>>, vector<1x128xf32>
      %22 = vector.broadcast %21 : vector<1x128xf32> to vector<128x128xf32>
      %23 = arith.addf %20, %22 : vector<128x128xf32>
      %cst_15 = arith.constant 0.000000e+00 : f32
      %24 = vector.broadcast %cst_15 : f32 to vector<128x128xf32>
      %25 = arith.maximumf %23, %24 : vector<128x128xf32>
      %26 = arith.truncf %25 : vector<128x128xf32> to vector<128x128xbf16>
      %c0_16 = arith.constant 0 : index
      %c0_17 = arith.constant 0 : index
      %27 = vector.load %arg6[%c0_16, %c0_17] : memref<128x128xbf16, #tpu.memory_space<vmem>>, vector<128x128xbf16>
      %cst_18 = arith.constant dense<0.000000e+00> : vector<128x128xf32>
      %28 = tpu.matmul %26, %27, %cst_18 {dimension_numbers = #tpu.dot_dimension_numbers<[1], [0], [0], [1], [0, 0, 1, 1], [], []>} : vector<128x128xbf16>, vector<128x128xbf16>, vector<128x128xf32> -> vector<128x128xf32>
      %29 = arith.truncf %28 : vector<128x128xf32> to vector<128x128xbf16>
      %c0_19 = arith.constant 0 : index
      %c0_20 = arith.constant 0 : index
      %30 = vector.load %arg7[%c0_19, %c0_20] : memref<128x128xbf16, #tpu.memory_space<vmem>>, vector<128x128xbf16>
      tpu.vector_store %arg7[%c0_19, %c0_20], %29 {strides = array<i32>} : memref<128x128xbf16, #tpu.memory_space<vmem>>, vector<128x128xbf16>,
    } else {
    }
    return
  }
  func.func @transform_0(%arg0: i32, %arg1: i32) -> (i32, i32) {
    %c0_i32 = arith.constant 0 : i32
    return %arg0, %arg1 : i32, i32
  }
  func.func @transform_1(%arg0: i32, %arg1: i32) -> (i32, i32) {
    %c0_i32 = arith.constant 0 : i32
    %c0_i32_0 = arith.constant 0 : i32
    %c0_i32_1 = arith.constant 0 : i32
    return %c0_i32, %c0_i32_0 : i32, i32
  }
  func.func @transform_2(%arg0: i32, %arg1: i32) -> (i32, i32) {
    %c0_i32 = arith.constant 0 : i32
    %c0_i32_0 = arith.constant 0 : i32
    return %arg0, %c0_i32 : i32, i32
  }
  func.func @transform_3(%arg0: i32, %arg1: i32) -> (i32, i32) {
    %c0_i32 = arith.constant 0 : i32
    %c0_i32_0 = arith.constant 0 : i32
    %c0_i32_1 = arith.constant 0 : i32
    return %c0_i32, %c0_i32_0 : i32, i32
  }
  func.func @transform_4(%arg0: i32, %arg1: i32) -> (i32, i32) {
    %c0_i32 = arith.constant 0 : i32
    %c0_i32_0 = arith.constant 0 : i32
    %c0_i32_1 = arith.constant 0 : i32
    return %c0_i32, %c0_i32_0 : i32, i32
  }
  func.func @transform_5(%arg0: i32, %arg1: i32) -> (i32, i32) {
    %c0_i32 = arith.constant 0 : i32
    %c0_i32_0 = arith.constant 0 : i32
    return %arg0, %c0_i32 : i32, i32
  }
}

module attributes {stable_mosaic.version = 11 : i64} {
  func.func @head_kernel(%arg0: i32, %arg1: memref<8x128xbf16, #tpu.memory_space<vmem>>, %arg2: memref<128x128xbf16, #tpu.memory_space<vmem>>, %arg3: memref<1x128xf32, #tpu.memory_space<vmem>>, %arg4: memref<128x128xf32, #tpu.memory_space<vmem>>, %arg5: memref<1x128xf32, #tpu.memory_space<vmem>>, %arg6: memref<8x128xf32, #tpu.memory_space<vmem>>, %arg7: memref<8x128xf32, #tpu.memory_space<vmem>>) attributes {dimension_semantics = [#tpu.dimension_semantics<arbitrary>], iteration_bounds = array<i64: 1>, scalar_prefetch = 0 : i64, scratch_operands = 1 : i64, tpu.core_type = #tpu.core_type<tc>, window_params = [{transform_indices = @transform_0, window_bounds = array<i64: 8, 128>}, {transform_indices = @transform_1, window_bounds = array<i64: 128, 128>}, {pipeline_mode = #tpu.pipeline_mode<synchronous>, transform_indices = @transform_2, window_bounds = array<i64: 1, 128>}, {pipeline_mode = #tpu.pipeline_mode<synchronous>, transform_indices = @transform_3, window_bounds = array<i64: 128, 128>}, {pipeline_mode = #tpu.pipeline_mode<synchronous>, transform_indices = @transform_4, window_bounds = array<i64: 1, 128>}, {pipeline_mode = #tpu.pipeline_mode<synchronous>, transform_indices = @transform_5, window_bounds = array<i64: 8, 128>}]} {
    %c0_i32 = arith.constant 0 : i32
    %0 = arith.cmpi eq, %arg0, %c0_i32 : i32
    %1 = arith.extui %0 : i1 to i32
    %c0_i32_0 = arith.constant 0 : i32
    %2 = arith.cmpi ne, %1, %c0_i32_0 : i32
    scf.if %2 {
      %cst_10 = arith.constant 0.000000e+00 : f32
      %12 = vector.broadcast %cst_10 : f32 to vector<8x128xf32>
      %c0_11 = arith.constant 0 : index
      %c0_12 = arith.constant 0 : index
      %13 = vector.load %arg7[%c0_11, %c0_12] : memref<8x128xf32, #tpu.memory_space<vmem>>, vector<8x128xf32>
      tpu.vector_store %arg7[%c0_11, %c0_12], %12 {strides = array<i32>} : memref<8x128xf32, #tpu.memory_space<vmem>>, vector<8x128xf32>,
    } else {
    }
    %c0 = arith.constant 0 : index
    %c0_1 = arith.constant 0 : index
    %3 = vector.load %arg7[%c0, %c0_1] : memref<8x128xf32, #tpu.memory_space<vmem>>, vector<8x128xf32>
    %c0_2 = arith.constant 0 : index
    %c0_3 = arith.constant 0 : index
    %4 = vector.load %arg1[%c0_2, %c0_3] : memref<8x128xbf16, #tpu.memory_space<vmem>>, vector<8x128xbf16>
    %c0_4 = arith.constant 0 : index
    %c0_5 = arith.constant 0 : index
    %5 = vector.load %arg2[%c0_4, %c0_5] : memref<128x128xbf16, #tpu.memory_space<vmem>>, vector<128x128xbf16>
    %cst = arith.constant dense<0.000000e+00> : vector<8x128xf32>
    %6 = tpu.matmul %4, %5, %cst {dimension_numbers = #tpu.dot_dimension_numbers<[1], [0], [0], [1], [0, 0, 1, 1], [], []>} : vector<8x128xbf16>, vector<128x128xbf16>, vector<8x128xf32> -> vector<8x128xf32>
    %7 = arith.addf %3, %6 : vector<8x128xf32>
    %c0_6 = arith.constant 0 : index
    %c0_7 = arith.constant 0 : index
    %8 = vector.load %arg7[%c0_6, %c0_7] : memref<8x128xf32, #tpu.memory_space<vmem>>, vector<8x128xf32>
    tpu.vector_store %arg7[%c0_6, %c0_7], %7 {strides = array<i32>} : memref<8x128xf32, #tpu.memory_space<vmem>>, vector<8x128xf32>,
    %c0_i32_8 = arith.constant 0 : i32
    %9 = arith.cmpi eq, %arg0, %c0_i32_8 : i32
    %10 = arith.extui %9 : i1 to i32
    %c0_i32_9 = arith.constant 0 : i32
    %11 = arith.cmpi ne, %10, %c0_i32_9 : i32
    scf.if %11 {
      %c0_10 = arith.constant 0 : index
      %c0_11 = arith.constant 0 : index
      %12 = vector.load %arg7[%c0_10, %c0_11] : memref<8x128xf32, #tpu.memory_space<vmem>>, vector<8x128xf32>
      %c0_12 = arith.constant 0 : index
      %c0_13 = arith.constant 0 : index
      %13 = vector.load %arg3[%c0_12, %c0_13] : memref<1x128xf32, #tpu.memory_space<vmem>>, vector<1x128xf32>
      %14 = vector.broadcast %13 : vector<1x128xf32> to vector<8x128xf32>
      %15 = arith.addf %12, %14 : vector<8x128xf32>
      %c0_14 = arith.constant 0 : index
      %c0_15 = arith.constant 0 : index
      %16 = vector.load %arg4[%c0_14, %c0_15] : memref<128x128xf32, #tpu.memory_space<vmem>>, vector<128x128xf32>
      %cst_16 = arith.constant dense<0.000000e+00> : vector<8x128xf32>
      %17 = tpu.matmul %15, %16, %cst_16 {dimension_numbers = #tpu.dot_dimension_numbers<[1], [0], [0], [1], [0, 0, 1, 1], [], []>} : vector<8x128xf32>, vector<128x128xf32>, vector<8x128xf32> -> vector<8x128xf32>
      %c0_17 = arith.constant 0 : index
      %c0_18 = arith.constant 0 : index
      %18 = vector.load %arg5[%c0_17, %c0_18] : memref<1x128xf32, #tpu.memory_space<vmem>>, vector<1x128xf32>
      %19 = vector.broadcast %18 : vector<1x128xf32> to vector<8x128xf32>
      %20 = arith.addf %17, %19 : vector<8x128xf32>
      %c0_19 = arith.constant 0 : index
      %c0_20 = arith.constant 0 : index
      %21 = vector.load %arg6[%c0_19, %c0_20] : memref<8x128xf32, #tpu.memory_space<vmem>>, vector<8x128xf32>
      tpu.vector_store %arg6[%c0_19, %c0_20], %20 {strides = array<i32>} : memref<8x128xf32, #tpu.memory_space<vmem>>, vector<8x128xf32>,
    } else {
    }
    return
  }
  func.func @transform_0(%arg0: i32) -> (i32, i32) {
    %c0_i32 = arith.constant 0 : i32
    %c0_i32_0 = arith.constant 0 : i32
    return %c0_i32, %arg0 : i32, i32
  }
  func.func @transform_1(%arg0: i32) -> (i32, i32) {
    %c0_i32 = arith.constant 0 : i32
    %c0_i32_0 = arith.constant 0 : i32
    return %arg0, %c0_i32 : i32, i32
  }
  func.func @transform_2(%arg0: i32) -> (i32, i32) {
    %c0_i32 = arith.constant 0 : i32
    %c0_i32_0 = arith.constant 0 : i32
    %c0_i32_1 = arith.constant 0 : i32
    return %c0_i32, %c0_i32_0 : i32, i32
  }
  func.func @transform_3(%arg0: i32) -> (i32, i32) {
    %c0_i32 = arith.constant 0 : i32
    %c0_i32_0 = arith.constant 0 : i32
    %c0_i32_1 = arith.constant 0 : i32
    return %c0_i32, %c0_i32_0 : i32, i32
  }
  func.func @transform_4(%arg0: i32) -> (i32, i32) {
    %c0_i32 = arith.constant 0 : i32
    %c0_i32_0 = arith.constant 0 : i32
    %c0_i32_1 = arith.constant 0 : i32
    return %c0_i32, %c0_i32_0 : i32, i32
  }
  func.func @transform_5(%arg0: i32) -> (i32, i32) {
    %c0_i32 = arith.constant 0 : i32
    %c0_i32_0 = arith.constant 0 : i32
    %c0_i32_1 = arith.constant 0 : i32
    return %c0_i32, %c0_i32_0 : i32, i32
  }
}

</mosaic_0001>

<llo_original>
// kernel: gnn_forward.3
$region0: #{gnn_forward.3}
  #allocation0 [shape = 'u32[]', space=smem, size = 0x4, offset = 0x4, fixed_abs, tag = 'smem constant byte address 0x4 - core index']
  #allocation1 [shape = 'u32[144,128]{1,0:T(1,128)}', space=vmem, size = 0x12000, scoped, tag = 'internal scratch']
  %s0 = inlined_call_operand.vmem [shape: bf16[128,128], index: 0, kind: input, shape index: {}]
  %s1 = inlined_call_operand.vmem [shape: bf16[128,128], index: 1, kind: input, shape index: {}]
  %s2 = inlined_call_operand.vmem [shape: f32[128,1], index: 2, kind: input, shape index: {}]
  %s3 = inlined_call_operand.vmem [shape: bf16[128,128], index: 3, kind: output, shape index: {}]
  %s4 = sld [smem:[#allocation0]]
  $region22: #{gnn_forward.3} parent=0
    _
  %s6 = ssub.s32 1, %s4
  %s7 = scalar_select 0, %s6, %s4
  // Predicated region
  $region2: #{gnn_forward.3} parent=0 // pred_check
    _
  $region3: #{gnn_forward.3} parent=0 // pred_check_branch
    %9 = sbr.rel (0) target = $region5
  $region4: #{gnn_forward.3} parent=0 // pred_region
    _
  $region5: #{gnn_forward.3} parent=0 // pred_fallthru
    _
  // Predicated region
  $region6: #{gnn_forward.3} parent=0 // pred_check
    _
  $region7: #{gnn_forward.3} parent=0 // pred_check_branch
    %11 = sbr.rel (0) target = $region9
  $region8: #{gnn_forward.3} parent=0 // pred_region
    _
  $region9: #{gnn_forward.3} parent=0 // pred_fallthru
    _
  // Predicated region
  $region10: #{gnn_forward.3} parent=0 // pred_check
    _
  $region11: #{gnn_forward.3} parent=0 // pred_check_branch
    %13 = sbr.rel (0) target = $region13
  $region12: #{gnn_forward.3} parent=0 // pred_region
    _
  $region13: #{gnn_forward.3} parent=0 // pred_fallthru
    _
  %v15 = vld [vmem:[%s0] sm:$0xf]
  %v16 = vld [vmem:[%s0 + $0x4] sm:$0xf]
  %v17 = vld [vmem:[%s0 + $0x8] sm:$0xf]
  %v18 = vld [vmem:[%s0 + $0xc] sm:$0xf]
  %v19 = vld [vmem:[%s0 + $0x10] sm:$0xf]
  %v20 = vld [vmem:[%s0 + $0x14] sm:$0xf]
  %v21 = vld [vmem:[%s0 + $0x18] sm:$0xf]
  %v22 = vld [vmem:[%s0 + $0x1c] sm:$0xf]
  %v23 = vld [vmem:[%s0 + $0x20] sm:$0xf]
  %v24 = vld [vmem:[%s0 + $0x24] sm:$0xf]
  %v25 = vld [vmem:[%s0 + $0x28] sm:$0xf]
  %v26 = vld [vmem:[%s0 + $0x2c] sm:$0xf]
  %v27 = vld [vmem:[%s0 + $0x30] sm:$0xf]
  %v28 = vld [vmem:[%s0 + $0x34] sm:$0xf]
  %v29 = vld [vmem:[%s0 + $0x38] sm:$0xf]
  %v30 = vld [vmem:[%s0 + $0x3c] sm:$0xf]
  %v31 = vld [vmem:[%s1] sm:$0xf]
  %v32 = vld [vmem:[%s1 + $0x4] sm:$0xf]
  %v33 = vld [vmem:[%s1 + $0x8] sm:$0xf]
  %v34 = vld [vmem:[%s1 + $0xc] sm:$0xf]
  %v35 = vld [vmem:[%s1 + $0x10] sm:$0xf]
  %v36 = vld [vmem:[%s1 + $0x14] sm:$0xf]
  %v37 = vld [vmem:[%s1 + $0x18] sm:$0xf]
  %v38 = vld [vmem:[%s1 + $0x1c] sm:$0xf]
  %v39 = vld [vmem:[%s1 + $0x20] sm:$0xf]
  %v40 = vld [vmem:[%s1 + $0x24] sm:$0xf]
  %v41 = vld [vmem:[%s1 + $0x28] sm:$0xf]
  %v42 = vld [vmem:[%s1 + $0x2c] sm:$0xf]
  %v43 = vld [vmem:[%s1 + $0x30] sm:$0xf]
  %v44 = vld [vmem:[%s1 + $0x34] sm:$0xf]
  %v45 = vld [vmem:[%s1 + $0x38] sm:$0xf]
  %v46 = vld [vmem:[%s1 + $0x3c] sm:$0xf]
  %v63 = vunpack.c.l.b16 %v15
  %v64 = vunpack.c.l.b16 %v16
  %v65 = vunpack.c.l.b16 %v17
  %v66 = vunpack.c.l.b16 %v18
  %v67 = vunpack.c.l.b16 %v19
  %v68 = vunpack.c.l.b16 %v20
  %v69 = vunpack.c.l.b16 %v21
  %v70 = vunpack.c.l.b16 %v22
  %v71 = vunpack.c.l.b16 %v23
  %v72 = vunpack.c.l.b16 %v24
  %v73 = vunpack.c.l.b16 %v25
  %v74 = vunpack.c.l.b16 %v26
  %v75 = vunpack.c.l.b16 %v27
  %v76 = vunpack.c.l.b16 %v28
  %v77 = vunpack.c.l.b16 %v29
  %v78 = vunpack.c.l.b16 %v30
  %v79 = vpack.c.b16 %v64, %v63
  %v80 = vpack.c.b16 %v66, %v65
  %v81 = vpack.c.b16 %v68, %v67
  %v82 = vpack.c.b16 %v70, %v69
  %v83 = vpack.c.b16 %v72, %v71
  %v84 = vpack.c.b16 %v74, %v73
  %v85 = vpack.c.b16 %v76, %v75
  %v86 = vpack.c.b16 %v78, %v77
  %v111 = vunpack.c.l.b16 %v31
  %v112 = vunpack.c.l.b16 %v32
  %v113 = vunpack.c.l.b16 %v33
  %v114 = vunpack.c.l.b16 %v34
  %v115 = vunpack.c.l.b16 %v35
  %v116 = vunpack.c.l.b16 %v36
  %v117 = vunpack.c.l.b16 %v37
  %v118 = vunpack.c.l.b16 %v38
  %v119 = vunpack.c.l.b16 %v39
  %v120 = vunpack.c.l.b16 %v40
  %v121 = vunpack.c.l.b16 %v41
  %v122 = vunpack.c.l.b16 %v42
  %v123 = vunpack.c.l.b16 %v43
  %v124 = vunpack.c.l.b16 %v44
  %v125 = vunpack.c.l.b16 %v45
  %v126 = vunpack.c.l.b16 %v46
  %v127 = vpack.c.b16 %v112, %v111
  %v128 = vpack.c.b16 %v114, %v113
  %v129 = vpack.c.b16 %v116, %v115
  %v130 = vpack.c.b16 %v118, %v117
  %v131 = vpack.c.b16 %v120, %v119
  %v132 = vpack.c.b16 %v122, %v121
  %v133 = vpack.c.b16 %v124, %v123
  %v134 = vpack.c.b16 %v126, %v125
  %143 = vmatprep.subr.bf16.mxu0 0
  %144 = vmatpush1.bf16.msra.mxu0 %v134
  %145 = vmatprep.subr.bf16.mxu0 0
  %146 = vmatpush1.bf16.msra.mxu0 %v133
  %147 = vmatprep.subr.bf16.mxu0 0
  %148 = vmatpush1.bf16.msra.mxu0 %v132
  %149 = vmatprep.subr.bf16.mxu0 0
  %150 = vmatpush1.bf16.msra.mxu0 %v131
  %151 = vmatprep.subr.bf16.mxu0 0
  %152 = vmatpush1.bf16.msra.mxu0 %v130
  %153 = vmatprep.subr.bf16.mxu0 0
  %154 = vmatpush1.bf16.msra.mxu0 %v129
  %155 = vmatprep.subr.bf16.mxu0 0
  %156 = vmatpush1.bf16.msra.mxu0 %v128
  %157 = vmatprep.subr.bf16.mxu0 0
  %158 = vmatpush1.bf16.msra.mxu0 %v127
  %159 = vmatprep.subr.bf16.mxu0 0
  %160 = vmatpush2.bf16.msra.mxu0 0
  %161 = vmatprep.subr.bf16.mxu0 0
  %162 = vmatpush2.bf16.msra.mxu0 0
  %163 = vmatprep.subr.bf16.mxu0 0
  %164 = vmatpush2.bf16.msra.mxu0 0
  %165 = vmatprep.subr.bf16.mxu0 0
  %166 = vmatpush2.bf16.msra.mxu0 0
  %167 = vmatprep.subr.bf16.mxu0 0
  %168 = vmatpush2.bf16.msra.mxu0 0
  %169 = vmatprep.subr.bf16.mxu0 0
  %170 = vmatpush2.bf16.msra.mxu0 0
  %171 = vmatprep.subr.bf16.mxu0 0
  %172 = vmatpush2.bf16.msra.mxu0 0
  %173 = vmatprep.subr.bf16.mxu0 0
  %174 = vmatpush2.bf16.msra.mxu0 0
  %175 = vmatprep.mubr.bf16.mxu0 0
  %176 = vmatmul.mubr.bf16.gmra.mxu0 %v79
  %v177 = vpop.f32.mrf.mxu0
  %v178 = vadd.f32 0.0, %v177
  %v179 = vpop.f32.mrf.mxu0
  %v180 = vpop.f32.mrf.mxu0
  %v181 = vadd.f32 0.0, %v180
  %v182 = vpop.f32.mrf.mxu0
  %183 = vmatprep.mubr.bf16.mxu0 0
  %184 = vmatmul.mubr.bf16.gmra.mxu0 %v80
  %v185 = vpop.f32.mrf.mxu0
  %v186 = vadd.f32 0.0, %v185
  %v187 = vpop.f32.mrf.mxu0
  %v188 = vpop.f32.mrf.mxu0
  %v189 = vadd.f32 0.0, %v188
  %v190 = vpop.f32.mrf.mxu0
  %191 = vmatprep.mubr.bf16.mxu0 0
  %192 = vmatmul.mubr.bf16.gmra.mxu0 %v81
  %v193 = vpop.f32.mrf.mxu0
  %v194 = vadd.f32 0.0, %v193
  %v195 = vpop.f32.mrf.mxu0
  %v196 = vpop.f32.mrf.mxu0
  %v197 = vadd.f32 0.0, %v196
  %v198 = vpop.f32.mrf.mxu0
  %199 = vmatprep.mubr.bf16.mxu0 0
  %200 = vmatmul.mubr.bf16.gmra.mxu0 %v82
  %v201 = vpop.f32.mrf.mxu0
  %v202 = vadd.f32 0.0, %v201
  %v203 = vpop.f32.mrf.mxu0
  %v204 = vpop.f32.mrf.mxu0
  %v205 = vadd.f32 0.0, %v204
  %v206 = vpop.f32.mrf.mxu0
  %207 = vmatprep.mubr.bf16.mxu0 0
  %208 = vmatmul.mubr.bf16.gmra.mxu0 %v83
  %v209 = vpop.f32.mrf.mxu0
  %v210 = vadd.f32 0.0, %v209
  %v211 = vpop.f32.mrf.mxu0
  %v212 = vpop.f32.mrf.mxu0
  %v213 = vadd.f32 0.0, %v212
  %v214 = vpop.f32.mrf.mxu0
  %215 = vmatprep.mubr.bf16.mxu0 0
  %216 = vmatmul.mubr.bf16.gmra.mxu0 %v84
  %v217 = vpop.f32.mrf.mxu0
  %v218 = vadd.f32 0.0, %v217
  %v219 = vpop.f32.mrf.mxu0
  %v220 = vpop.f32.mrf.mxu0
  %v221 = vadd.f32 0.0, %v220
  %v222 = vpop.f32.mrf.mxu0
  %223 = vmatprep.mubr.bf16.mxu0 0
  %224 = vmatmul.mubr.bf16.gmra.mxu0 %v85
  %v225 = vpop.f32.mrf.mxu0
  %v226 = vadd.f32 0.0, %v225
  %v227 = vpop.f32.mrf.mxu0
  %v228 = vpop.f32.mrf.mxu0
  %v229 = vadd.f32 0.0, %v228
  %v230 = vpop.f32.mrf.mxu0
  %231 = vmatprep.mubr.bf16.mxu0 0
  %232 = vmatmul.mubr.bf16.gmra.mxu0 %v86
  %v233 = vpop.f32.mrf.mxu0
  %v234 = vadd.f32 0.0, %v233
  %v235 = vpop.f32.mrf.mxu0
  %v236 = vpop.f32.mrf.mxu0
  %v237 = vadd.f32 0.0, %v236
  %v238 = vpop.f32.mrf.mxu0
  %239 = vdwg.mxu0
  %v240 = vld [vmem:[%s2] sm:$0xff]
  %v241 = vld [vmem:[%s2 + $0x8] sm:$0xff]
  %v242 = vld [vmem:[%s2 + $0x10] sm:$0xff]
  %v243 = vld [vmem:[%s2 + $0x18] sm:$0xff]
  %v244 = vld [vmem:[%s2 + $0x20] sm:$0xff]
  %v245 = vld [vmem:[%s2 + $0x28] sm:$0xff]
  %v246 = vld [vmem:[%s2 + $0x30] sm:$0xff]
  %v247 = vld [vmem:[%s2 + $0x38] sm:$0xff]
  %v248 = vld [vmem:[%s2 + $0x40] sm:$0xff]
  %v249 = vld [vmem:[%s2 + $0x48] sm:$0xff]
  %v250 = vld [vmem:[%s2 + $0x50] sm:$0xff]
  %v251 = vld [vmem:[%s2 + $0x58] sm:$0xff]
  %v252 = vld [vmem:[%s2 + $0x60] sm:$0xff]
  %v253 = vld [vmem:[%s2 + $0x68] sm:$0xff]
  %v254 = vld [vmem:[%s2 + $0x70] sm:$0xff]
  %v255 = vld [vmem:[%s2 + $0x78] sm:$0xff]
  %257 = vset.pattern.permute.xlu0 0
  %258 = vperm.xlu0 %257, %v240
  %v259 = vpop.permute.xlu0 %258
  %262 = vset.pattern.permute.xlu0 0
  %263 = vperm.xlu0 %262, %v241
  %v264 = vpop.permute.xlu0 %263
  %267 = vset.pattern.permute.xlu0 0
  %268 = vperm.xlu0 %267, %v242
  %v269 = vpop.permute.xlu0 %268
  %272 = vset.pattern.permute.xlu0 0
  %273 = vperm.xlu0 %272, %v243
  %v274 = vpop.permute.xlu0 %273
  %277 = vset.pattern.permute.xlu0 0
  %278 = vperm.xlu0 %277, %v244
  %v279 = vpop.permute.xlu0 %278
  %282 = vset.pattern.permute.xlu0 0
  %283 = vperm.xlu0 %282, %v245
  %v284 = vpop.permute.xlu0 %283
  %287 = vset.pattern.permute.xlu0 0
  %288 = vperm.xlu0 %287, %v246
  %v289 = vpop.permute.xlu0 %288
  %292 = vset.pattern.permute.xlu0 0
  %293 = vperm.xlu0 %292, %v247
  %v294 = vpop.permute.xlu0 %293
  %297 = vset.pattern.permute.xlu0 0
  %298 = vperm.xlu0 %297, %v248
  %v299 = vpop.permute.xlu0 %298
  %302 = vset.pattern.permute.xlu0 0
  %303 = vperm.xlu0 %302, %v249
  %v304 = vpop.permute.xlu0 %303
  %307 = vset.pattern.permute.xlu0 0
  %308 = vperm.xlu0 %307, %v250
  %v309 = vpop.permute.xlu0 %308
  %312 = vset.pattern.permute.xlu0 0
  %313 = vperm.xlu0 %312, %v251
  %v314 = vpop.permute.xlu0 %313
  %317 = vset.pattern.permute.xlu0 0
  %318 = vperm.xlu0 %317, %v252
  %v319 = vpop.permute.xlu0 %318
  %322 = vset.pattern.permute.xlu0 0
  %323 = vperm.xlu0 %322, %v253
  %v324 = vpop.permute.xlu0 %323
  %327 = vset.pattern.permute.xlu0 0
  %328 = vperm.xlu0 %327, %v254
  %v329 = vpop.permute.xlu0 %328
  %332 = vset.pattern.permute.xlu0 0
  %333 = vperm.xlu0 %332, %v255
  %v334 = vpop.permute.xlu0 %333
  %v336 = vmul.f32 %v178, %v259
  %v337 = vmul.f32 %v181, %v264
  %v338 = vmul.f32 %v186, %v269
  %v339 = vmul.f32 %v189, %v274
  %v340 = vmul.f32 %v194, %v279
  %v341 = vmul.f32 %v197, %v284
  %v342 = vmul.f32 %v202, %v289
  %v343 = vmul.f32 %v205, %v294
  %v344 = vmul.f32 %v210, %v299
  %v345 = vmul.f32 %v213, %v304
  %v346 = vmul.f32 %v218, %v309
  %v347 = vmul.f32 %v221, %v314
  %v348 = vmul.f32 %v226, %v319
  %v349 = vmul.f32 %v229, %v324
  %v350 = vmul.f32 %v234, %v329
  %v351 = vmul.f32 %v237, %v334
  %v352 = vpack.c.bf16 %v337, %v336
  %v353 = vpack.c.bf16 %v339, %v338
  %v354 = vpack.c.bf16 %v341, %v340
  %v355 = vpack.c.bf16 %v343, %v342
  %v356 = vpack.c.bf16 %v345, %v344
  %v357 = vpack.c.bf16 %v347, %v346
  %v358 = vpack.c.bf16 %v349, %v348
  %v359 = vpack.c.bf16 %v351, %v350
  %v368 = vunpack.c.l.b16 %v352
  %v369 = vunpack.c.h.b16 %v352
  %v370 = vunpack.c.l.b16 %v353
  %v371 = vunpack.c.h.b16 %v353
  %v372 = vunpack.c.l.b16 %v354
  %v373 = vunpack.c.h.b16 %v354
  %v374 = vunpack.c.l.b16 %v355
  %v375 = vunpack.c.h.b16 %v355
  %v376 = vunpack.c.l.b16 %v356
  %v377 = vunpack.c.h.b16 %v356
  %v378 = vunpack.c.l.b16 %v357
  %v379 = vunpack.c.h.b16 %v357
  %v380 = vunpack.c.l.b16 %v358
  %v381 = vunpack.c.h.b16 %v358
  %v382 = vunpack.c.l.b16 %v359
  %v383 = vunpack.c.h.b16 %v359
  %v384 = vpack.c.b16 %v368, %v368
  %v385 = vpack.c.b16 %v369, %v369
  %v386 = vpack.c.b16 %v370, %v370
  %v387 = vpack.c.b16 %v371, %v371
  %v388 = vpack.c.b16 %v372, %v372
  %v389 = vpack.c.b16 %v373, %v373
  %v390 = vpack.c.b16 %v374, %v374
  %v391 = vpack.c.b16 %v375, %v375
  %v392 = vpack.c.b16 %v376, %v376
  %v393 = vpack.c.b16 %v377, %v377
  %v394 = vpack.c.b16 %v378, %v378
  %v395 = vpack.c.b16 %v379, %v379
  %v396 = vpack.c.b16 %v380, %v380
  %v397 = vpack.c.b16 %v381, %v381
  %v398 = vpack.c.b16 %v382, %v382
  %v399 = vpack.c.b16 %v383, %v383
  %416 = vst [vmem:[%s3] sm:$0xf] %v384
  %417 = vst [vmem:[%s3 + $0x4] sm:$0xf] %v385
  %418 = vst [vmem:[%s3 + $0x8] sm:$0xf] %v386
  %419 = vst [vmem:[%s3 + $0xc] sm:$0xf] %v387
  %420 = vst [vmem:[%s3 + $0x10] sm:$0xf] %v388
  %421 = vst [vmem:[%s3 + $0x14] sm:$0xf] %v389
  %422 = vst [vmem:[%s3 + $0x18] sm:$0xf] %v390
  %423 = vst [vmem:[%s3 + $0x1c] sm:$0xf] %v391
  %424 = vst [vmem:[%s3 + $0x20] sm:$0xf] %v392
  %425 = vst [vmem:[%s3 + $0x24] sm:$0xf] %v393
  %426 = vst [vmem:[%s3 + $0x28] sm:$0xf] %v394
  %427 = vst [vmem:[%s3 + $0x2c] sm:$0xf] %v395
  %428 = vst [vmem:[%s3 + $0x30] sm:$0xf] %v396
  %429 = vst [vmem:[%s3 + $0x34] sm:$0xf] %v397
  %430 = vst [vmem:[%s3 + $0x38] sm:$0xf] %v398
  %431 = vst [vmem:[%s3 + $0x3c] sm:$0xf] %v399
  // Predicated region
  $region14: #{gnn_forward.3} parent=0 // pred_check
    _
  $region15: #{gnn_forward.3} parent=0 // pred_check_branch
    %433 = sbr.rel (0) target = $region17
  $region16: #{gnn_forward.3} parent=0 // pred_region
    _
  $region17: #{gnn_forward.3} parent=0 // pred_fallthru
    _
  // Predicated region
  $region18: #{gnn_forward.3} parent=0 // pred_check
    _
  $region19: #{gnn_forward.3} parent=0 // pred_check_branch
    %435 = sbr.rel (0) target = $region21
  $region20: #{gnn_forward.3} parent=0 // pred_region
    _
  $region21: #{gnn_forward.3} parent=0 // pred_fallthru
    _

// kernel: gnn_forward.5
$region0: #{gnn_forward.5}
  #allocation0 [shape = 'u32[]', space=smem, size = 0x4, offset = 0x4, fixed_abs, tag = 'smem constant byte address 0x4 - core index']
  #allocation1 [shape = 'u32[144,128]{1,0:T(1,128)}', space=vmem, size = 0x12000, scoped, tag = 'internal scratch']
  #allocation2 [shape = 'f32[8,128]{1,0:T(8,128)}', space=vmem, size = 0x1000, scoped, tag = 'scratch operand']
  %s0 = inlined_call_operand.vmem [shape: bf16[8,128], index: 0, kind: input, shape index: {}]
  %s1 = inlined_call_operand.vmem [shape: bf16[128,128], index: 1, kind: input, shape index: {}]
  %s2 = inlined_call_operand.vmem [shape: f32[1,128], index: 2, kind: input, shape index: {}]
  %s3 = inlined_call_operand.vmem [shape: f32[128,128], index: 3, kind: input, shape index: {}]
  %s4 = inlined_call_operand.vmem [shape: f32[1,128], index: 4, kind: input, shape index: {}]
  %s5 = inlined_call_operand.vmem [shape: f32[8,128], index: 5, kind: output, shape index: {}]
  %s6 = sld [smem:[#allocation0]]
  $region38: #{gnn_forward.5} parent=0
    _
  %s8 = ssub.s32 1, %s6
  %s9 = scalar_select 0, %s8, %s6
  // Predicated region
  $region2: #{gnn_forward.5} parent=0 // pred_check
    _
  $region3: #{gnn_forward.5} parent=0 // pred_check_branch
    %11 = sbr.rel (0) target = $region5
  $region4: #{gnn_forward.5} parent=0 // pred_region
    _
  $region5: #{gnn_forward.5} parent=0 // pred_fallthru
    _
  // Predicated region
  $region6: #{gnn_forward.5} parent=0 // pred_check
    _
  $region7: #{gnn_forward.5} parent=0 // pred_check_branch
    %13 = sbr.rel (0) target = $region9
  $region8: #{gnn_forward.5} parent=0 // pred_region
    _
  $region9: #{gnn_forward.5} parent=0 // pred_fallthru
    _
  // Predicated region
  $region10: #{gnn_forward.5} parent=0 // pred_check
    _
  $region11: #{gnn_forward.5} parent=0 // pred_check_branch
    %15 = sbr.rel (0) target = $region13
  $region12: #{gnn_forward.5} parent=0 // pred_region
    _
  $region13: #{gnn_forward.5} parent=0 // pred_fallthru
    _
  // Predicated region
  $region14: #{gnn_forward.5} parent=0 // pred_check
    _
  $region15: #{gnn_forward.5} parent=0 // pred_check_branch
    %17 = sbr.rel (0) target = $region17
  $region16: #{gnn_forward.5} parent=0 // pred_region
    _
  $region17: #{gnn_forward.5} parent=0 // pred_fallthru
    _
  // Predicated region
  $region18: #{gnn_forward.5} parent=0 // pred_check
    _
  $region19: #{gnn_forward.5} parent=0 // pred_check_branch
    %19 = sbr.rel (0) target = $region21
  $region20: #{gnn_forward.5} parent=0 // pred_region
    _
  $region21: #{gnn_forward.5} parent=0 // pred_fallthru
    _
  %p21 = scmp.eq.s32.totalorder 0, 0
  // Predicated region
  $region22: #{gnn_forward.5} parent=0 // pred_check
    %p22 = pneg %p21
  $region23: #{gnn_forward.5} parent=0 // pred_check_branch
    %24 = sbr.rel (%p22) target = $region25
  $region24: #{gnn_forward.5} parent=0 // pred_region
    %25 = vst [vmem:[#allocation2] sm:$0xff] 0.0
  $region25: #{gnn_forward.5} parent=0 // pred_fallthru
    _
  %v26 = vld [vmem:[#allocation2] sm:$0xff]
  %v27 = vld [vmem:[%s0] sm:$0xf]
  %v28 = vld [vmem:[%s1] sm:$0xf]
  %v29 = vld [vmem:[%s1 + $0x4] sm:$0xf]
  %v30 = vld [vmem:[%s1 + $0x8] sm:$0xf]
  %v31 = vld [vmem:[%s1 + $0xc] sm:$0xf]
  %v32 = vld [vmem:[%s1 + $0x10] sm:$0xf]
  %v33 = vld [vmem:[%s1 + $0x14] sm:$0xf]
  %v34 = vld [vmem:[%s1 + $0x18] sm:$0xf]
  %v35 = vld [vmem:[%s1 + $0x1c] sm:$0xf]
  %v36 = vld [vmem:[%s1 + $0x20] sm:$0xf]
  %v37 = vld [vmem:[%s1 + $0x24] sm:$0xf]
  %v38 = vld [vmem:[%s1 + $0x28] sm:$0xf]
  %v39 = vld [vmem:[%s1 + $0x2c] sm:$0xf]
  %v40 = vld [vmem:[%s1 + $0x30] sm:$0xf]
  %v41 = vld [vmem:[%s1 + $0x34] sm:$0xf]
  %v42 = vld [vmem:[%s1 + $0x38] sm:$0xf]
  %v43 = vld [vmem:[%s1 + $0x3c] sm:$0xf]
  %v60 = vunpack.c.l.b16 %v28
  %v61 = vunpack.c.l.b16 %v29
  %v62 = vunpack.c.l.b16 %v30
  %v63 = vunpack.c.l.b16 %v31
  %v64 = vunpack.c.l.b16 %v32
  %v65 = vunpack.c.l.b16 %v33
  %v66 = vunpack.c.l.b16 %v34
  %v67 = vunpack.c.l.b16 %v35
  %v68 = vunpack.c.l.b16 %v36
  %v69 = vunpack.c.l.b16 %v37
  %v70 = vunpack.c.l.b16 %v38
  %v71 = vunpack.c.l.b16 %v39
  %v72 = vunpack.c.l.b16 %v40
  %v73 = vunpack.c.l.b16 %v41
  %v74 = vunpack.c.l.b16 %v42
  %v75 = vunpack.c.l.b16 %v43
  %v76 = vpack.c.b16 %v61, %v60
  %v77 = vpack.c.b16 %v63, %v62
  %v78 = vpack.c.b16 %v65, %v64
  %v79 = vpack.c.b16 %v67, %v66
  %v80 = vpack.c.b16 %v69, %v68
  %v81 = vpack.c.b16 %v71, %v70
  %v82 = vpack.c.b16 %v73, %v72
  %v83 = vpack.c.b16 %v75, %v74
  %92 = vmatprep.subr.bf16.mxu0 0
  %93 = vmatpush1.bf16.msra.mxu0 %v83
  %94 = vmatprep.subr.bf16.mxu0 0
  %95 = vmatpush1.bf16.msra.mxu0 %v82
  %96 = vmatprep.subr.bf16.mxu0 0
  %97 = vmatpush1.bf16.msra.mxu0 %v81
  %98 = vmatprep.subr.bf16.mxu0 0
  %99 = vmatpush1.bf16.msra.mxu0 %v80
  %100 = vmatprep.subr.bf16.mxu0 0
  %101 = vmatpush1.bf16.msra.mxu0 %v79
  %102 = vmatprep.subr.bf16.mxu0 0
  %103 = vmatpush1.bf16.msra.mxu0 %v78
  %104 = vmatprep.subr.bf16.mxu0 0
  %105 = vmatpush1.bf16.msra.mxu0 %v77
  %106 = vmatprep.subr.bf16.mxu0 0
  %107 = vmatpush1.bf16.msra.mxu0 %v76
  %108 = vmatprep.subr.bf16.mxu0 0
  %109 = vmatpush2.bf16.msra.mxu0 0
  %110 = vmatprep.subr.bf16.mxu0 0
  %111 = vmatpush2.bf16.msra.mxu0 0
  %112 = vmatprep.subr.bf16.mxu0 0
  %113 = vmatpush2.bf16.msra.mxu0 0
  %114 = vmatprep.subr.bf16.mxu0 0
  %115 = vmatpush2.bf16.msra.mxu0 0
  %116 = vmatprep.subr.bf16.mxu0 0
  %117 = vmatpush2.bf16.msra.mxu0 0
  %118 = vmatprep.subr.bf16.mxu0 0
  %119 = vmatpush2.bf16.msra.mxu0 0
  %120 = vmatprep.subr.bf16.mxu0 0
  %121 = vmatpush2.bf16.msra.mxu0 0
  %122 = vmatprep.subr.bf16.mxu0 0
  %123 = vmatpush2.bf16.msra.mxu0 0
  %124 = vmatprep.mubr.bf16.mxu0 0
  %125 = vmatmul.mubr.bf16.gmra.mxu0 %v27
  %v126 = vpop.f32.mrf.mxu0
  %v127 = vadd.f32 0.0, %v126
  %v128 = vpop.f32.mrf.mxu0
  %v129 = vpop.f32.mrf.mxu0
  %v130 = vpop.f32.mrf.mxu0
  %131 = vdwg.mxu0
  %v132 = vadd.f32 %v26, %v127
  %133 = vst [vmem:[#allocation2] sm:$0xff] %v132
  // Predicated region
  $region26: #{gnn_forward.5} parent=0 // pred_check
    %p134 = pneg %p21
  $region27: #{gnn_forward.5} parent=0 // pred_check_branch
    %136 = sbr.rel (%p134) target = $region29
  $region28: #{gnn_forward.5} parent=0 // pred_region
    %v137 = vld [vmem:[#allocation2] sm:$0xff]
    %v138 = vld [vmem:[%s2] sm:$0x1]
    %v140 = vlaneseq
    %v141 = vshrl.u32 %v140, 7
    %v142 = vsub.s32 0, %v141
    %v143 = vrot.slane %v138, %v142
    %v145 = vadd.f32 %v137, %v143
    %v146 = vld [vmem:[%s3] sm:$0xff]
    %v147 = vld [vmem:[%s3 + $0x8] sm:$0xff]
    %v148 = vld [vmem:[%s3 + $0x10] sm:$0xff]
    %v149 = vld [vmem:[%s3 + $0x18] sm:$0xff]
    %v150 = vld [vmem:[%s3 + $0x20] sm:$0xff]
    %v151 = vld [vmem:[%s3 + $0x28] sm:$0xff]
    %v152 = vld [vmem:[%s3 + $0x30] sm:$0xff]
    %v153 = vld [vmem:[%s3 + $0x38] sm:$0xff]
    %v154 = vld [vmem:[%s3 + $0x40] sm:$0xff]
    %v155 = vld [vmem:[%s3 + $0x48] sm:$0xff]
    %v156 = vld [vmem:[%s3 + $0x50] sm:$0xff]
    %v157 = vld [vmem:[%s3 + $0x58] sm:$0xff]
    %v158 = vld [vmem:[%s3 + $0x60] sm:$0xff]
    %v159 = vld [vmem:[%s3 + $0x68] sm:$0xff]
    %v160 = vld [vmem:[%s3 + $0x70] sm:$0xff]
    %v161 = vld [vmem:[%s3 + $0x78] sm:$0xff]
    %v162 = vld [vmem:[%s4] sm:$0x1]
    %v164 = vlaneseq
    %v165 = vshrl.u32 %v164, 7
    %v166 = vsub.s32 0, %v165
    %v167 = vrot.slane %v162, %v166
    %169 = vmatprep.subr.mxu0 0.0
    %170 = vmatpush1.msra.mxu0 %v161
    %171 = vmatprep.subr.mxu0 0.0
    %172 = vmatpush1.msra.mxu0 %v160
    %173 = vmatprep.subr.mxu0 0.0
    %174 = vmatpush1.msra.mxu0 %v159
    %175 = vmatprep.subr.mxu0 0.0
    %176 = vmatpush1.msra.mxu0 %v158
    %177 = vmatprep.subr.mxu0 0.0
    %178 = vmatpush1.msra.mxu0 %v157
    %179 = vmatprep.subr.mxu0 0.0
    %180 = vmatpush1.msra.mxu0 %v156
    %181 = vmatprep.subr.mxu0 0.0
    %182 = vmatpush1.msra.mxu0 %v155
    %183 = vmatprep.subr.mxu0 0.0
    %184 = vmatpush1.msra.mxu0 %v154
    %185 = vmatprep.subr.mxu0 0.0
    %186 = vmatpush1.msra.mxu0 %v153
    %187 = vmatprep.subr.mxu0 0.0
    %188 = vmatpush1.msra.mxu0 %v152
    %189 = vmatprep.subr.mxu0 0.0
    %190 = vmatpush1.msra.mxu0 %v151
    %191 = vmatprep.subr.mxu0 0.0
    %192 = vmatpush1.msra.mxu0 %v150
    %193 = vmatprep.subr.mxu0 0.0
    %194 = vmatpush1.msra.mxu0 %v149
    %195 = vmatprep.subr.mxu0 0.0
    %196 = vmatpush1.msra.mxu0 %v148
    %197 = vmatprep.subr.mxu0 0.0
    %198 = vmatpush1.msra.mxu0 %v147
    %199 = vmatprep.subr.mxu0 0.0
    %200 = vmatpush1.msra.mxu0 %v146
    %201 = vmatprep.subr.mxu0 0.0
    %202 = vmatpush2.msra.mxu0 0.0
    %203 = vmatprep.subr.mxu0 0.0
    %204 = vmatpush2.msra.mxu0 0.0
    %205 = vmatprep.subr.mxu0 0.0
    %206 = vmatpush2.msra.mxu0 0.0
    %207 = vmatprep.subr.mxu0 0.0
    %208 = vmatpush2.msra.mxu0 0.0
    %209 = vmatprep.subr.mxu0 0.0
    %210 = vmatpush2.msra.mxu0 0.0
    %211 = vmatprep.subr.mxu0 0.0
    %212 = vmatpush2.msra.mxu0 0.0
    %213 = vmatprep.subr.mxu0 0.0
    %214 = vmatpush2.msra.mxu0 0.0
    %215 = vmatprep.subr.mxu0 0.0
    %216 = vmatpush2.msra.mxu0 0.0
    %217 = vmatprep.subr.mxu0 0.0
    %218 = vmatpush2.msra.mxu0 0.0
    %219 = vmatprep.subr.mxu0 0.0
    %220 = vmatpush2.msra.mxu0 0.0
    %221 = vmatprep.subr.mxu0 0.0
    %222 = vmatpush2.msra.mxu0 0.0
    %223 = vmatprep.subr.mxu0 0.0
    %224 = vmatpush2.msra.mxu0 0.0
    %225 = vmatprep.subr.mxu0 0.0
    %226 = vmatpush2.msra.mxu0 0.0
    %227 = vmatprep.subr.mxu0 0.0
    %228 = vmatpush2.msra.mxu0 0.0
    %229 = vmatprep.subr.mxu0 0.0
    %230 = vmatpush2.msra.mxu0 0.0
    %231 = vmatprep.subr.mxu0 0.0
    %232 = vmatpush2.msra.mxu0 0.0
    %233 = vmatprep.mubr.f32.mxu0 0.0
    %234 = vmatmul.mubr.f32.gmra.mxu0 %v145
    %v235 = vpop.f32.mrf.mxu0
    %v236 = vadd.f32 %v167, %v235
    %v237 = vpop.f32.mrf.mxu0
    %238 = vdwg.mxu0
    %239 = vst [vmem:[%s5] sm:$0xff] %v236
  $region29: #{gnn_forward.5} parent=0 // pred_fallthru
    _
  // Predicated region
  $region30: #{gnn_forward.5} parent=0 // pred_check
    _
  $region31: #{gnn_forward.5} parent=0 // pred_check_branch
    %241 = sbr.rel (0) target = $region33
  $region32: #{gnn_forward.5} parent=0 // pred_region
    _
  $region33: #{gnn_forward.5} parent=0 // pred_fallthru
    _
  // Predicated region
  $region34: #{gnn_forward.5} parent=0 // pred_check
    _
  $region35: #{gnn_forward.5} parent=0 // pred_check_branch
    %243 = sbr.rel (0) target = $region37
  $region36: #{gnn_forward.5} parent=0 // pred_region
    _
  $region37: #{gnn_forward.5} parent=0 // pred_fallthru
    _

// kernel: gnn_forward.4
$region0: #{gnn_forward.4}
  #allocation0 [shape = 'u32[]', space=smem, size = 0x4, offset = 0x4, fixed_abs, tag = 'smem constant byte address 0x4 - core index']
  #allocation1 [shape = 'u32[144,128]{1,0:T(1,128)}', space=vmem, size = 0x12000, scoped, tag = 'internal scratch']
  #allocation2 [shape = 'f32[128,128]{1,0:T(8,128)}', space=vmem, size = 0x10000, scoped, tag = 'scratch operand']
  %s0 = inlined_call_operand.vmem [shape: s8[128,128], index: 0, kind: input, shape index: {}]
  %s1 = inlined_call_operand.vmem [shape: bf16[128,128], index: 1, kind: input, shape index: {}]
  %s2 = inlined_call_operand.vmem [shape: f32[128,1], index: 2, kind: input, shape index: {}]
  %s3 = inlined_call_operand.vmem [shape: f32[1,128], index: 3, kind: input, shape index: {}]
  %s4 = inlined_call_operand.vmem [shape: bf16[128,128], index: 4, kind: input, shape index: {}]
  %s5 = inlined_call_operand.vmem [shape: bf16[128,128], index: 5, kind: output, shape index: {}]
  %s6 = sld [smem:[#allocation0]]
  $region38: #{gnn_forward.4} parent=0
    _
  %s8 = ssub.s32 1, %s6
  %s9 = scalar_select 0, %s8, %s6
  // Predicated region
  $region2: #{gnn_forward.4} parent=0 // pred_check
    _
  $region3: #{gnn_forward.4} parent=0 // pred_check_branch
    %11 = sbr.rel (0) target = $region5
  $region4: #{gnn_forward.4} parent=0 // pred_region
    _
  $region5: #{gnn_forward.4} parent=0 // pred_fallthru
    _
  // Predicated region
  $region6: #{gnn_forward.4} parent=0 // pred_check
    _
  $region7: #{gnn_forward.4} parent=0 // pred_check_branch
    %13 = sbr.rel (0) target = $region9
  $region8: #{gnn_forward.4} parent=0 // pred_region
    _
  $region9: #{gnn_forward.4} parent=0 // pred_fallthru
    _
  // Predicated region
  $region10: #{gnn_forward.4} parent=0 // pred_check
    _
  $region11: #{gnn_forward.4} parent=0 // pred_check_branch
    %15 = sbr.rel (0) target = $region13
  $region12: #{gnn_forward.4} parent=0 // pred_region
    _
  $region13: #{gnn_forward.4} parent=0 // pred_fallthru
    _
  // Predicated region
  $region14: #{gnn_forward.4} parent=0 // pred_check
    _
  $region15: #{gnn_forward.4} parent=0 // pred_check_branch
    %17 = sbr.rel (0) target = $region17
  $region16: #{gnn_forward.4} parent=0 // pred_region
    _
  $region17: #{gnn_forward.4} parent=0 // pred_fallthru
    _
  // Predicated region
  $region18: #{gnn_forward.4} parent=0 // pred_check
    _
  $region19: #{gnn_forward.4} parent=0 // pred_check_branch
    %19 = sbr.rel (0) target = $region21
  $region20: #{gnn_forward.4} parent=0 // pred_region
    _
  $region21: #{gnn_forward.4} parent=0 // pred_fallthru
    _
  %p21 = scmp.eq.s32.totalorder 0, 0
  // Predicated region
  $region22: #{gnn_forward.4} parent=0 // pred_check
    %p22 = pneg %p21
  $region23: #{gnn_forward.4} parent=0 // pred_check_branch
    %24 = sbr.rel (%p22) target = $region25
  $region24: #{gnn_forward.4} parent=0 // pred_region
    %25 = vst [vmem:[#allocation2] sm:$0xff] 0.0
    %26 = vst [vmem:[#allocation2 + $0x8] sm:$0xff] 0.0
    %27 = vst [vmem:[#allocation2 + $0x10] sm:$0xff] 0.0
    %28 = vst [vmem:[#allocation2 + $0x18] sm:$0xff] 0.0
    %29 = vst [vmem:[#allocation2 + $0x20] sm:$0xff] 0.0
    %30 = vst [vmem:[#allocation2 + $0x28] sm:$0xff] 0.0
    %31 = vst [vmem:[#allocation2 + $0x30] sm:$0xff] 0.0
    %32 = vst [vmem:[#allocation2 + $0x38] sm:$0xff] 0.0
    %33 = vst [vmem:[#allocation2 + $0x40] sm:$0xff] 0.0
    %34 = vst [vmem:[#allocation2 + $0x48] sm:$0xff] 0.0
    %35 = vst [vmem:[#allocation2 + $0x50] sm:$0xff] 0.0
    %36 = vst [vmem:[#allocation2 + $0x58] sm:$0xff] 0.0
    %37 = vst [vmem:[#allocation2 + $0x60] sm:$0xff] 0.0
    %38 = vst [vmem:[#allocation2 + $0x68] sm:$0xff] 0.0
    %39 = vst [vmem:[#allocation2 + $0x70] sm:$0xff] 0.0
    %40 = vst [vmem:[#allocation2 + $0x78] sm:$0xff] 0.0
  $region25: #{gnn_forward.4} parent=0 // pred_fallthru
    _
  %v41 = vld [vmem:[%s0] sm:$0xff]
  %v42 = vld [vmem:[%s0 + $0x8] sm:$0xff]
  %v43 = vld [vmem:[%s0 + $0x10] sm:$0xff]
  %v44 = vld [vmem:[%s0 + $0x18] sm:$0xff]
  %v45 = vunpack.c.l.s8.bf16 %v41
  %v46 = vunpack.c.h.s8.bf16 %v41
  %v47 = vunpack.c.l.s8.bf16 %v42
  %v48 = vunpack.c.h.s8.bf16 %v42
  %v49 = vunpack.c.l.s8.bf16 %v43
  %v50 = vunpack.c.h.s8.bf16 %v43
  %v51 = vunpack.c.l.s8.bf16 %v44
  %v52 = vunpack.c.h.s8.bf16 %v44
  %s53 = smul.u32 0, 128
  %s54 = sshra.s32 %s53, 3
  %s55 = sand.u32 %s53, 7
  %s56 = smul.addr %s54, 4
  %s57 = scalar_lea.vmem %s1, %s56
  %v58 = vld [vmem:[%s57] sm:$0xf]
  %v59 = vld [vmem:[%s57 + $0x4] sm:$0xf]
  %v60 = vld [vmem:[%s57 + $0x8] sm:$0xf]
  %v61 = vld [vmem:[%s57 + $0xc] sm:$0xf]
  %v62 = vld [vmem:[%s57 + $0x10] sm:$0xf]
  %v63 = vld [vmem:[%s57 + $0x14] sm:$0xf]
  %v64 = vld [vmem:[%s57 + $0x18] sm:$0xf]
  %v65 = vld [vmem:[%s57 + $0x1c] sm:$0xf]
  %v66 = vld [vmem:[%s57 + $0x20] sm:$0xf]
  %v67 = vld [vmem:[%s57 + $0x24] sm:$0xf]
  %v68 = vld [vmem:[%s57 + $0x28] sm:$0xf]
  %v69 = vld [vmem:[%s57 + $0x2c] sm:$0xf]
  %v70 = vld [vmem:[%s57 + $0x30] sm:$0xf]
  %v71 = vld [vmem:[%s57 + $0x34] sm:$0xf]
  %v72 = vld [vmem:[%s57 + $0x38] sm:$0xf]
  %v73 = vld [vmem:[%s57 + $0x3c] sm:$0xf]
  %v74 = vld [vmem:[#allocation2] sm:$0xff]
  %v75 = vld [vmem:[#allocation2 + $0x8] sm:$0xff]
  %v76 = vld [vmem:[#allocation2 + $0x10] sm:$0xff]
  %v77 = vld [vmem:[#allocation2 + $0x18] sm:$0xff]
  %v78 = vld [vmem:[#allocation2 + $0x20] sm:$0xff]
  %v79 = vld [vmem:[#allocation2 + $0x28] sm:$0xff]
  %v80 = vld [vmem:[#allocation2 + $0x30] sm:$0xff]
  %v81 = vld [vmem:[#allocation2 + $0x38] sm:$0xff]
  %v82 = vld [vmem:[#allocation2 + $0x40] sm:$0xff]
  %v83 = vld [vmem:[#allocation2 + $0x48] sm:$0xff]
  %v84 = vld [vmem:[#allocation2 + $0x50] sm:$0xff]
  %v85 = vld [vmem:[#allocation2 + $0x58] sm:$0xff]
  %v86 = vld [vmem:[#allocation2 + $0x60] sm:$0xff]
  %v87 = vld [vmem:[#allocation2 + $0x68] sm:$0xff]
  %v88 = vld [vmem:[#allocation2 + $0x70] sm:$0xff]
  %v89 = vld [vmem:[#allocation2 + $0x78] sm:$0xff]
  %v106 = vunpack.c.l.b16 %v58
  %v107 = vunpack.c.l.b16 %v59
  %v108 = vunpack.c.l.b16 %v60
  %v109 = vunpack.c.l.b16 %v61
  %v110 = vunpack.c.l.b16 %v62
  %v111 = vunpack.c.l.b16 %v63
  %v112 = vunpack.c.l.b16 %v64
  %v113 = vunpack.c.l.b16 %v65
  %v114 = vunpack.c.l.b16 %v66
  %v115 = vunpack.c.l.b16 %v67
  %v116 = vunpack.c.l.b16 %v68
  %v117 = vunpack.c.l.b16 %v69
  %v118 = vunpack.c.l.b16 %v70
  %v119 = vunpack.c.l.b16 %v71
  %v120 = vunpack.c.l.b16 %v72
  %v121 = vunpack.c.l.b16 %v73
  %v122 = vpack.c.b16 %v107, %v106
  %v123 = vpack.c.b16 %v109, %v108
  %v124 = vpack.c.b16 %v111, %v110
  %v125 = vpack.c.b16 %v113, %v112
  %v126 = vpack.c.b16 %v115, %v114
  %v127 = vpack.c.b16 %v117, %v116
  %v128 = vpack.c.b16 %v119, %v118
  %v129 = vpack.c.b16 %v121, %v120
  %138 = vmatprep.subr.bf16.mxu0 0
  %139 = vmatpush1.bf16.msra.mxu0 %v129
  %140 = vmatprep.subr.bf16.mxu0 0
  %141 = vmatpush1.bf16.msra.mxu0 %v128
  %142 = vmatprep.subr.bf16.mxu0 0
  %143 = vmatpush1.bf16.msra.mxu0 %v127
  %144 = vmatprep.subr.bf16.mxu0 0
  %145 = vmatpush1.bf16.msra.mxu0 %v126
  %146 = vmatprep.subr.bf16.mxu0 0
  %147 = vmatpush1.bf16.msra.mxu0 %v125
  %148 = vmatprep.subr.bf16.mxu0 0
  %149 = vmatpush1.bf16.msra.mxu0 %v124
  %150 = vmatprep.subr.bf16.mxu0 0
  %151 = vmatpush1.bf16.msra.mxu0 %v123
  %152 = vmatprep.subr.bf16.mxu0 0
  %153 = vmatpush1.bf16.msra.mxu0 %v122
  %154 = vmatprep.subr.bf16.mxu0 0
  %155 = vmatpush2.bf16.msra.mxu0 0
  %156 = vmatprep.subr.bf16.mxu0 0
  %157 = vmatpush2.bf16.msra.mxu0 0
  %158 = vmatprep.subr.bf16.mxu0 0
  %159 = vmatpush2.bf16.msra.mxu0 0
  %160 = vmatprep.subr.bf16.mxu0 0
  %161 = vmatpush2.bf16.msra.mxu0 0
  %162 = vmatprep.subr.bf16.mxu0 0
  %163 = vmatpush2.bf16.msra.mxu0 0
  %164 = vmatprep.subr.bf16.mxu0 0
  %165 = vmatpush2.bf16.msra.mxu0 0
  %166 = vmatprep.subr.bf16.mxu0 0
  %167 = vmatpush2.bf16.msra.mxu0 0
  %168 = vmatprep.subr.bf16.mxu0 0
  %169 = vmatpush2.bf16.msra.mxu0 0
  %170 = vmatprep.mubr.bf16.mxu0 0
  %171 = vmatmul.mubr.bf16.gmra.mxu0 %v45
  %v172 = vpop.f32.mrf.mxu0
  %v173 = vadd.f32 0.0, %v172
  %v174 = vpop.f32.mrf.mxu0
  %v175 = vpop.f32.mrf.mxu0
  %v176 = vadd.f32 0.0, %v175
  %v177 = vpop.f32.mrf.mxu0
  %178 = vmatprep.mubr.bf16.mxu0 0
  %179 = vmatmul.mubr.bf16.gmra.mxu0 %v46
  %v180 = vpop.f32.mrf.mxu0
  %v181 = vadd.f32 0.0, %v180
  %v182 = vpop.f32.mrf.mxu0
  %v183 = vpop.f32.mrf.mxu0
  %v184 = vadd.f32 0.0, %v183
  %v185 = vpop.f32.mrf.mxu0
  %186 = vmatprep.mubr.bf16.mxu0 0
  %187 = vmatmul.mubr.bf16.gmra.mxu0 %v47
  %v188 = vpop.f32.mrf.mxu0
  %v189 = vadd.f32 0.0, %v188
  %v190 = vpop.f32.mrf.mxu0
  %v191 = vpop.f32.mrf.mxu0
  %v192 = vadd.f32 0.0, %v191
  %v193 = vpop.f32.mrf.mxu0
  %194 = vmatprep.mubr.bf16.mxu0 0
  %195 = vmatmul.mubr.bf16.gmra.mxu0 %v48
  %v196 = vpop.f32.mrf.mxu0
  %v197 = vadd.f32 0.0, %v196
  %v198 = vpop.f32.mrf.mxu0
  %v199 = vpop.f32.mrf.mxu0
  %v200 = vadd.f32 0.0, %v199
  %v201 = vpop.f32.mrf.mxu0
  %202 = vmatprep.mubr.bf16.mxu0 0
  %203 = vmatmul.mubr.bf16.gmra.mxu0 %v49
  %v204 = vpop.f32.mrf.mxu0
  %v205 = vadd.f32 0.0, %v204
  %v206 = vpop.f32.mrf.mxu0
  %v207 = vpop.f32.mrf.mxu0
  %v208 = vadd.f32 0.0, %v207
  %v209 = vpop.f32.mrf.mxu0
  %210 = vmatprep.mubr.bf16.mxu0 0
  %211 = vmatmul.mubr.bf16.gmra.mxu0 %v50
  %v212 = vpop.f32.mrf.mxu0
  %v213 = vadd.f32 0.0, %v212
  %v214 = vpop.f32.mrf.mxu0
  %v215 = vpop.f32.mrf.mxu0
  %v216 = vadd.f32 0.0, %v215
  %v217 = vpop.f32.mrf.mxu0
  %218 = vmatprep.mubr.bf16.mxu0 0
  %219 = vmatmul.mubr.bf16.gmra.mxu0 %v51
  %v220 = vpop.f32.mrf.mxu0
  %v221 = vadd.f32 0.0, %v220
  %v222 = vpop.f32.mrf.mxu0
  %v223 = vpop.f32.mrf.mxu0
  %v224 = vadd.f32 0.0, %v223
  %v225 = vpop.f32.mrf.mxu0
  %226 = vmatprep.mubr.bf16.mxu0 0
  %227 = vmatmul.mubr.bf16.gmra.mxu0 %v52
  %v228 = vpop.f32.mrf.mxu0
  %v229 = vadd.f32 0.0, %v228
  %v230 = vpop.f32.mrf.mxu0
  %v231 = vpop.f32.mrf.mxu0
  %v232 = vadd.f32 0.0, %v231
  %v233 = vpop.f32.mrf.mxu0
  %234 = vdwg.mxu0
  %v235 = vadd.f32 %v74, %v173
  %v236 = vadd.f32 %v75, %v176
  %v237 = vadd.f32 %v76, %v181
  %v238 = vadd.f32 %v77, %v184
  %v239 = vadd.f32 %v78, %v189
  %v240 = vadd.f32 %v79, %v192
  %v241 = vadd.f32 %v80, %v197
  %v242 = vadd.f32 %v81, %v200
  %v243 = vadd.f32 %v82, %v205
  %v244 = vadd.f32 %v83, %v208
  %v245 = vadd.f32 %v84, %v213
  %v246 = vadd.f32 %v85, %v216
  %v247 = vadd.f32 %v86, %v221
  %v248 = vadd.f32 %v87, %v224
  %v249 = vadd.f32 %v88, %v229
  %v250 = vadd.f32 %v89, %v232
  %251 = vst [vmem:[#allocation2] sm:$0xff] %v235
  %252 = vst [vmem:[#allocation2 + $0x8] sm:$0xff] %v236
  %253 = vst [vmem:[#allocation2 + $0x10] sm:$0xff] %v237
  %254 = vst [vmem:[#allocation2 + $0x18] sm:$0xff] %v238
  %255 = vst [vmem:[#allocation2 + $0x20] sm:$0xff] %v239
  %256 = vst [vmem:[#allocation2 + $0x28] sm:$0xff] %v240
  %257 = vst [vmem:[#allocation2 + $0x30] sm:$0xff] %v241
  %258 = vst [vmem:[#allocation2 + $0x38] sm:$0xff] %v242
  %259 = vst [vmem:[#allocation2 + $0x40] sm:$0xff] %v243
  %260 = vst [vmem:[#allocation2 + $0x48] sm:$0xff] %v244
  %261 = vst [vmem:[#allocation2 + $0x50] sm:$0xff] %v245
  %262 = vst [vmem:[#allocation2 + $0x58] sm:$0xff] %v246
  %263 = vst [vmem:[#allocation2 + $0x60] sm:$0xff] %v247
  %264 = vst [vmem:[#allocation2 + $0x68] sm:$0xff] %v248
  %265 = vst [vmem:[#allocation2 + $0x70] sm:$0xff] %v249
  %266 = vst [vmem:[#allocation2 + $0x78] sm:$0xff] %v250
  // Predicated region
  $region26: #{gnn_forward.4} parent=0 // pred_check
    %p267 = pneg %p21
  $region27: #{gnn_forward.4} parent=0 // pred_check_branch
    %269 = sbr.rel (%p267) target = $region29
  $region28: #{gnn_forward.4} parent=0 // pred_region
    %v270 = vld [vmem:[#allocation2] sm:$0xff]
    %v271 = vld [vmem:[#allocation2 + $0x8] sm:$0xff]
    %v272 = vld [vmem:[#allocation2 + $0x10] sm:$0xff]
    %v273 = vld [vmem:[#allocation2 + $0x18] sm:$0xff]
    %v274 = vld [vmem:[#allocation2 + $0x20] sm:$0xff]
    %v275 = vld [vmem:[#allocation2 + $0x28] sm:$0xff]
    %v276 = vld [vmem:[#allocation2 + $0x30] sm:$0xff]
    %v277 = vld [vmem:[#allocation2 + $0x38] sm:$0xff]
    %v278 = vld [vmem:[#allocation2 + $0x40] sm:$0xff]
    %v279 = vld [vmem:[#allocation2 + $0x48] sm:$0xff]
    %v280 = vld [vmem:[#allocation2 + $0x50] sm:$0xff]
    %v281 = vld [vmem:[#allocation2 + $0x58] sm:$0xff]
    %v282 = vld [vmem:[#allocation2 + $0x60] sm:$0xff]
    %v283 = vld [vmem:[#allocation2 + $0x68] sm:$0xff]
    %v284 = vld [vmem:[#allocation2 + $0x70] sm:$0xff]
    %v285 = vld [vmem:[#allocation2 + $0x78] sm:$0xff]
    %v286 = vld [vmem:[%s2] sm:$0xff]
    %v287 = vld [vmem:[%s2 + $0x8] sm:$0xff]
    %v288 = vld [vmem:[%s2 + $0x10] sm:$0xff]
    %v289 = vld [vmem:[%s2 + $0x18] sm:$0xff]
    %v290 = vld [vmem:[%s2 + $0x20] sm:$0xff]
    %v291 = vld [vmem:[%s2 + $0x28] sm:$0xff]
    %v292 = vld [vmem:[%s2 + $0x30] sm:$0xff]
    %v293 = vld [vmem:[%s2 + $0x38] sm:$0xff]
    %v294 = vld [vmem:[%s2 + $0x40] sm:$0xff]
    %v295 = vld [vmem:[%s2 + $0x48] sm:$0xff]
    %v296 = vld [vmem:[%s2 + $0x50] sm:$0xff]
    %v297 = vld [vmem:[%s2 + $0x58] sm:$0xff]
    %v298 = vld [vmem:[%s2 + $0x60] sm:$0xff]
    %v299 = vld [vmem:[%s2 + $0x68] sm:$0xff]
    %v300 = vld [vmem:[%s2 + $0x70] sm:$0xff]
    %v301 = vld [vmem:[%s2 + $0x78] sm:$0xff]
    %303 = vset.pattern.permute.xlu0 0
    %304 = vperm.xlu0 %303, %v286
    %v305 = vpop.permute.xlu0 %304
    %308 = vset.pattern.permute.xlu0 0
    %309 = vperm.xlu0 %308, %v287
    %v310 = vpop.permute.xlu0 %309
    %313 = vset.pattern.permute.xlu0 0
    %314 = vperm.xlu0 %313, %v288
    %v315 = vpop.permute.xlu0 %314
    %318 = vset.pattern.permute.xlu0 0
    %319 = vperm.xlu0 %318, %v289
    %v320 = vpop.permute.xlu0 %319
    %323 = vset.pattern.permute.xlu0 0
    %324 = vperm.xlu0 %323, %v290
    %v325 = vpop.permute.xlu0 %324
    %328 = vset.pattern.permute.xlu0 0
    %329 = vperm.xlu0 %328, %v291
    %v330 = vpop.permute.xlu0 %329
    %333 = vset.pattern.permute.xlu0 0
    %334 = vperm.xlu0 %333, %v292
    %v335 = vpop.permute.xlu0 %334
    %338 = vset.pattern.permute.xlu0 0
    %339 = vperm.xlu0 %338, %v293
    %v340 = vpop.permute.xlu0 %339
    %343 = vset.pattern.permute.xlu0 0
    %344 = vperm.xlu0 %343, %v294
    %v345 = vpop.permute.xlu0 %344
    %348 = vset.pattern.permute.xlu0 0
    %349 = vperm.xlu0 %348, %v295
    %v350 = vpop.permute.xlu0 %349
    %353 = vset.pattern.permute.xlu0 0
    %354 = vperm.xlu0 %353, %v296
    %v355 = vpop.permute.xlu0 %354
    %358 = vset.pattern.permute.xlu0 0
    %359 = vperm.xlu0 %358, %v297
    %v360 = vpop.permute.xlu0 %359
    %363 = vset.pattern.permute.xlu0 0
    %364 = vperm.xlu0 %363, %v298
    %v365 = vpop.permute.xlu0 %364
    %368 = vset.pattern.permute.xlu0 0
    %369 = vperm.xlu0 %368, %v299
    %v370 = vpop.permute.xlu0 %369
    %373 = vset.pattern.permute.xlu0 0
    %374 = vperm.xlu0 %373, %v300
    %v375 = vpop.permute.xlu0 %374
    %378 = vset.pattern.permute.xlu0 0
    %379 = vperm.xlu0 %378, %v301
    %v380 = vpop.permute.xlu0 %379
    %v382 = vmul.f32 %v270, %v305
    %v383 = vmul.f32 %v271, %v310
    %v384 = vmul.f32 %v272, %v315
    %v385 = vmul.f32 %v273, %v320
    %v386 = vmul.f32 %v274, %v325
    %v387 = vmul.f32 %v275, %v330
    %v388 = vmul.f32 %v276, %v335
    %v389 = vmul.f32 %v277, %v340
    %v390 = vmul.f32 %v278, %v345
    %v391 = vmul.f32 %v279, %v350
    %v392 = vmul.f32 %v280, %v355
    %v393 = vmul.f32 %v281, %v360
    %v394 = vmul.f32 %v282, %v365
    %v395 = vmul.f32 %v283, %v370
    %v396 = vmul.f32 %v284, %v375
    %v397 = vmul.f32 %v285, %v380
    %v398 = vld [vmem:[%s3] sm:$0x1]
    %v400 = vlaneseq
    %v401 = vshrl.u32 %v400, 7
    %v402 = vsub.s32 0, %v401
    %v403 = vrot.slane %v398, %v402
    %v405 = vadd.f32 %v382, %v403
    %v406 = vadd.f32 %v383, %v403
    %v407 = vadd.f32 %v384, %v403
    %v408 = vadd.f32 %v385, %v403
    %v409 = vadd.f32 %v386, %v403
    %v410 = vadd.f32 %v387, %v403
    %v411 = vadd.f32 %v388, %v403
    %v412 = vadd.f32 %v389, %v403
    %v413 = vadd.f32 %v390, %v403
    %v414 = vadd.f32 %v391, %v403
    %v415 = vadd.f32 %v392, %v403
    %v416 = vadd.f32 %v393, %v403
    %v417 = vadd.f32 %v394, %v403
    %v418 = vadd.f32 %v395, %v403
    %v419 = vadd.f32 %v396, %v403
    %v420 = vadd.f32 %v397, %v403
    %v421 = vmax.f32 %v405, 0.0
    %v422 = vmax.f32 %v406, 0.0
    %v423 = vmax.f32 %v407, 0.0
    %v424 = vmax.f32 %v408, 0.0
    %v425 = vmax.f32 %v409, 0.0
    %v426 = vmax.f32 %v410, 0.0
    %v427 = vmax.f32 %v411, 0.0
    %v428 = vmax.f32 %v412, 0.0
    %v429 = vmax.f32 %v413, 0.0
    %v430 = vmax.f32 %v414, 0.0
    %v431 = vmax.f32 %v415, 0.0
    %v432 = vmax.f32 %v416, 0.0
    %v433 = vmax.f32 %v417, 0.0
    %v434 = vmax.f32 %v418, 0.0
    %v435 = vmax.f32 %v419, 0.0
    %v436 = vmax.f32 %v420, 0.0
    %v437 = vpack.c.bf16 %v422, %v421
    %v438 = vpack.c.bf16 %v424, %v423
    %v439 = vpack.c.bf16 %v426, %v425
    %v440 = vpack.c.bf16 %v428, %v427
    %v441 = vpack.c.bf16 %v430, %v429
    %v442 = vpack.c.bf16 %v432, %v431
    %v443 = vpack.c.bf16 %v434, %v433
    %v444 = vpack.c.bf16 %v436, %v435
    %v445 = vld [vmem:[%s4] sm:$0xf]
    %v446 = vld [vmem:[%s4 + $0x4] sm:$0xf]
    %v447 = vld [vmem:[%s4 + $0x8] sm:$0xf]
    %v448 = vld [vmem:[%s4 + $0xc] sm:$0xf]
    %v449 = vld [vmem:[%s4 + $0x10] sm:$0xf]
    %v450 = vld [vmem:[%s4 + $0x14] sm:$0xf]
    %v451 = vld [vmem:[%s4 + $0x18] sm:$0xf]
    %v452 = vld [vmem:[%s4 + $0x1c] sm:$0xf]
    %v453 = vld [vmem:[%s4 + $0x20] sm:$0xf]
    %v454 = vld [vmem:[%s4 + $0x24] sm:$0xf]
    %v455 = vld [vmem:[%s4 + $0x28] sm:$0xf]
    %v456 = vld [vmem:[%s4 + $0x2c] sm:$0xf]
    %v457 = vld [vmem:[%s4 + $0x30] sm:$0xf]
    %v458 = vld [vmem:[%s4 + $0x34] sm:$0xf]
    %v459 = vld [vmem:[%s4 + $0x38] sm:$0xf]
    %v460 = vld [vmem:[%s4 + $0x3c] sm:$0xf]
    %v477 = vunpack.c.l.b16 %v445
    %v478 = vunpack.c.l.b16 %v446
    %v479 = vunpack.c.l.b16 %v447
    %v480 = vunpack.c.l.b16 %v448
    %v481 = vunpack.c.l.b16 %v449
    %v482 = vunpack.c.l.b16 %v450
    %v483 = vunpack.c.l.b16 %v451
    %v484 = vunpack.c.l.b16 %v452
    %v485 = vunpack.c.l.b16 %v453
    %v486 = vunpack.c.l.b16 %v454
    %v487 = vunpack.c.l.b16 %v455
    %v488 = vunpack.c.l.b16 %v456
    %v489 = vunpack.c.l.b16 %v457
    %v490 = vunpack.c.l.b16 %v458
    %v491 = vunpack.c.l.b16 %v459
    %v492 = vunpack.c.l.b16 %v460
    %v493 = vpack.c.b16 %v478, %v477
    %v494 = vpack.c.b16 %v480, %v479
    %v495 = vpack.c.b16 %v482, %v481
    %v496 = vpack.c.b16 %v484, %v483
    %v497 = vpack.c.b16 %v486, %v485
    %v498 = vpack.c.b16 %v488, %v487
    %v499 = vpack.c.b16 %v490, %v489
    %v500 = vpack.c.b16 %v492, %v491
    %509 = vmatprep.subr.bf16.mxu0 0
    %510 = vmatpush1.bf16.msra.mxu0 %v500
    %511 = vmatprep.subr.bf16.mxu0 0
    %512 = vmatpush1.bf16.msra.mxu0 %v499
    %513 = vmatprep.subr.bf16.mxu0 0
    %514 = vmatpush1.bf16.msra.mxu0 %v498
    %515 = vmatprep.subr.bf16.mxu0 0
    %516 = vmatpush1.bf16.msra.mxu0 %v497
    %517 = vmatprep.subr.bf16.mxu0 0
    %518 = vmatpush1.bf16.msra.mxu0 %v496
    %519 = vmatprep.subr.bf16.mxu0 0
    %520 = vmatpush1.bf16.msra.mxu0 %v495
    %521 = vmatprep.subr.bf16.mxu0 0
    %522 = vmatpush1.bf16.msra.mxu0 %v494
    %523 = vmatprep.subr.bf16.mxu0 0
    %524 = vmatpush1.bf16.msra.mxu0 %v493
    %525 = vmatprep.subr.bf16.mxu0 0
    %526 = vmatpush2.bf16.msra.mxu0 0
    %527 = vmatprep.subr.bf16.mxu0 0
    %528 = vmatpush2.bf16.msra.mxu0 0
    %529 = vmatprep.subr.bf16.mxu0 0
    %530 = vmatpush2.bf16.msra.mxu0 0
    %531 = vmatprep.subr.bf16.mxu0 0
    %532 = vmatpush2.bf16.msra.mxu0 0
    %533 = vmatprep.subr.bf16.mxu0 0
    %534 = vmatpush2.bf16.msra.mxu0 0
    %535 = vmatprep.subr.bf16.mxu0 0
    %536 = vmatpush2.bf16.msra.mxu0 0
    %537 = vmatprep.subr.bf16.mxu0 0
    %538 = vmatpush2.bf16.msra.mxu0 0
    %539 = vmatprep.subr.bf16.mxu0 0
    %540 = vmatpush2.bf16.msra.mxu0 0
    %541 = vmatprep.mubr.bf16.mxu0 0
    %542 = vmatmul.mubr.bf16.gmra.mxu0 %v437
    %v543 = vpop.f32.mrf.mxu0
    %v544 = vadd.f32 0.0, %v543
    %v545 = vpop.f32.mrf.mxu0
    %v546 = vpop.f32.mrf.mxu0
    %v547 = vadd.f32 0.0, %v546
    %v548 = vpop.f32.mrf.mxu0
    %549 = vmatprep.mubr.bf16.mxu0 0
    %550 = vmatmul.mubr.bf16.gmra.mxu0 %v438
    %v551 = vpop.f32.mrf.mxu0
    %v552 = vadd.f32 0.0, %v551
    %v553 = vpop.f32.mrf.mxu0
    %v554 = vpop.f32.mrf.mxu0
    %v555 = vadd.f32 0.0, %v554
    %v556 = vpop.f32.mrf.mxu0
    %557 = vmatprep.mubr.bf16.mxu0 0
    %558 = vmatmul.mubr.bf16.gmra.mxu0 %v439
    %v559 = vpop.f32.mrf.mxu0
    %v560 = vadd.f32 0.0, %v559
    %v561 = vpop.f32.mrf.mxu0
    %v562 = vpop.f32.mrf.mxu0
    %v563 = vadd.f32 0.0, %v562
    %v564 = vpop.f32.mrf.mxu0
    %565 = vmatprep.mubr.bf16.mxu0 0
    %566 = vmatmul.mubr.bf16.gmra.mxu0 %v440
    %v567 = vpop.f32.mrf.mxu0
    %v568 = vadd.f32 0.0, %v567
    %v569 = vpop.f32.mrf.mxu0
    %v570 = vpop.f32.mrf.mxu0
    %v571 = vadd.f32 0.0, %v570
    %v572 = vpop.f32.mrf.mxu0
    %573 = vmatprep.mubr.bf16.mxu0 0
    %574 = vmatmul.mubr.bf16.gmra.mxu0 %v441
    %v575 = vpop.f32.mrf.mxu0
    %v576 = vadd.f32 0.0, %v575
    %v577 = vpop.f32.mrf.mxu0
    %v578 = vpop.f32.mrf.mxu0
    %v579 = vadd.f32 0.0, %v578
    %v580 = vpop.f32.mrf.mxu0
    %581 = vmatprep.mubr.bf16.mxu0 0
    %582 = vmatmul.mubr.bf16.gmra.mxu0 %v442
    %v583 = vpop.f32.mrf.mxu0
    %v584 = vadd.f32 0.0, %v583
    %v585 = vpop.f32.mrf.mxu0
    %v586 = vpop.f32.mrf.mxu0
    %v587 = vadd.f32 0.0, %v586
    %v588 = vpop.f32.mrf.mxu0
    %589 = vmatprep.mubr.bf16.mxu0 0
    %590 = vmatmul.mubr.bf16.gmra.mxu0 %v443
    %v591 = vpop.f32.mrf.mxu0
    %v592 = vadd.f32 0.0, %v591
    %v593 = vpop.f32.mrf.mxu0
    %v594 = vpop.f32.mrf.mxu0
    %v595 = vadd.f32 0.0, %v594
    %v596 = vpop.f32.mrf.mxu0
    %597 = vmatprep.mubr.bf16.mxu0 0
    %598 = vmatmul.mubr.bf16.gmra.mxu0 %v444
    %v599 = vpop.f32.mrf.mxu0
    %v600 = vadd.f32 0.0, %v599
    %v601 = vpop.f32.mrf.mxu0
    %v602 = vpop.f32.mrf.mxu0
    %v603 = vadd.f32 0.0, %v602
    %v604 = vpop.f32.mrf.mxu0
    %605 = vdwg.mxu0
    %v606 = vpack.c.bf16 %v547, %v544
    %v607 = vpack.c.bf16 %v555, %v552
    %v608 = vpack.c.bf16 %v563, %v560
    %v609 = vpack.c.bf16 %v571, %v568
    %v610 = vpack.c.bf16 %v579, %v576
    %v611 = vpack.c.bf16 %v587, %v584
    %v612 = vpack.c.bf16 %v595, %v592
    %v613 = vpack.c.bf16 %v603, %v600
    %v622 = vunpack.c.l.b16 %v606
    %v623 = vunpack.c.h.b16 %v606
    %v624 = vunpack.c.l.b16 %v607
    %v625 = vunpack.c.h.b16 %v607
    %v626 = vunpack.c.l.b16 %v608
    %v627 = vunpack.c.h.b16 %v608
    %v628 = vunpack.c.l.b16 %v609
    %v629 = vunpack.c.h.b16 %v609
    %v630 = vunpack.c.l.b16 %v610
    %v631 = vunpack.c.h.b16 %v610
    %v632 = vunpack.c.l.b16 %v611
    %v633 = vunpack.c.h.b16 %v611
    %v634 = vunpack.c.l.b16 %v612
    %v635 = vunpack.c.h.b16 %v612
    %v636 = vunpack.c.l.b16 %v613
    %v637 = vunpack.c.h.b16 %v613
    %v638 = vpack.c.b16 %v622, %v622
    %v639 = vpack.c.b16 %v623, %v623
    %v640 = vpack.c.b16 %v624, %v624
    %v641 = vpack.c.b16 %v625, %v625
    %v642 = vpack.c.b16 %v626, %v626
    %v643 = vpack.c.b16 %v627, %v627
    %v644 = vpack.c.b16 %v628, %v628
    %v645 = vpack.c.b16 %v629, %v629
    %v646 = vpack.c.b16 %v630, %v630
    %v647 = vpack.c.b16 %v631, %v631
    %v648 = vpack.c.b16 %v632, %v632
    %v649 = vpack.c.b16 %v633, %v633
    %v650 = vpack.c.b16 %v634, %v634
    %v651 = vpack.c.b16 %v635, %v635
    %v652 = vpack.c.b16 %v636, %v636
    %v653 = vpack.c.b16 %v637, %v637
    %670 = vst [vmem:[%s5] sm:$0xf] %v638
    %671 = vst [vmem:[%s5 + $0x4] sm:$0xf] %v639
    %672 = vst [vmem:[%s5 + $0x8] sm:$0xf] %v640
    %673 = vst [vmem:[%s5 + $0xc] sm:$0xf] %v641
    %674 = vst [vmem:[%s5 + $0x10] sm:$0xf] %v642
    %675 = vst [vmem:[%s5 + $0x14] sm:$0xf] %v643
    %676 = vst [vmem:[%s5 + $0x18] sm:$0xf] %v644
    %677 = vst [vmem:[%s5 + $0x1c] sm:$0xf] %v645
    %678 = vst [vmem:[%s5 + $0x20] sm:$0xf] %v646
    %679 = vst [vmem:[%s5 + $0x24] sm:$0xf] %v647
    %680 = vst [vmem:[%s5 + $0x28] sm:$0xf] %v648
    %681 = vst [vmem:[%s5 + $0x2c] sm:$0xf] %v649
    %682 = vst [vmem:[%s5 + $0x30] sm:$0xf] %v650
    %683 = vst [vmem:[%s5 + $0x34] sm:$0xf] %v651
    %684 = vst [vmem:[%s5 + $0x38] sm:$0xf] %v652
    %685 = vst [vmem:[%s5 + $0x3c] sm:$0xf] %v653
  $region29: #{gnn_forward.4} parent=0 // pred_fallthru
    _
  // Predicated region
  $region30: #{gnn_forward.4} parent=0 // pred_check
    _
  $region31: #{gnn_forward.4} parent=0 // pred_check_branch
    %687 = sbr.rel (0) target = $region33
  $region32: #{gnn_forward.4} parent=0 // pred_region
    _
  $region33: #{gnn_forward.4} parent=0 // pred_fallthru
    _
  // Predicated region
  $region34: #{gnn_forward.4} parent=0 // pred_check
    _
  $region35: #{gnn_forward.4} parent=0 // pred_check_branch
    %689 = sbr.rel (0) target = $region37
  $region36: #{gnn_forward.4} parent=0 // pred_region
    _
  $region37: #{gnn_forward.4} parent=0 // pred_fallthru
    _

</llo_original>
